<compile_context>
chip_gen: v7x
topology: tpu7x:2x2x1
jax: 0.10.0
libtpu: 0.0.40
codegen_flags: <defaults>
</compile_context>

<pallas_src>
import functools

import numpy as np
import jax
import jax.numpy as jnp
from jax import lax
from jax.experimental import pallas as pl
from jax.experimental.pallas import tpu as pltpu

EPS = 1e-5
_VMEM = pl.BlockSpec(memory_space=pltpu.MemorySpace.VMEM)


# ----------------------------------------------------------------------------
# Fused Pallas kernel
# ----------------------------------------------------------------------------
def _resblock_kernel(x_ref, w1_ref, w2_ref, sh_ref, smat_ref, gmat_ref, pp_ref,
                     *rest, has_proj: bool):
    """Fused residual block on lane-dense (N*H, W*C) f32 slabs.

    x_ref    : (M, W*Cin)          input slab, M = N*H, lane = w*Cin + c
    w1_ref   : (3, W*Cin,  W*Cout) band weights of conv1 (one per dy tap)
    w2_ref   : (3, W*Cout, W*Cout) band weights of conv2
    sh_ref   : (2, M, M)           0/1 row-shift matrices (dy = -1, +1)
    smat_ref : (Cout, W*Cout)      per-channel -> lane spread matrix
    gmat_ref : (W*Cout, Cout)      lane -> per-channel gather (sum) matrix
    pp_ref   : (4 or 6, Cout)      packed BN params [g1, be1, g2, be2, (gs, bes)]
    ws_ref   : (W*Cin, W*Cout)     block-diag 1x1 shortcut conv (if has_proj)
    out_ref  : (M, W*Cout)
    """
    if has_proj:
        ws_ref, out_ref = rest
    else:
        (out_ref,) = rest

    f32 = jnp.float32
    x2 = x_ref[...]
    sh_m = sh_ref[0]            # (M, M): picks row i-1 (zero at top border)
    sh_p = sh_ref[1]            # (M, M): picks row i+1 (zero at bottom border)
    smat = smat_ref[...]
    gmat = gmat_ref[...]
    pp = pp_ref[...]

    m_rows = x2.shape[0]
    cout = smat.shape[0]
    wcout = smat.shape[1]
    inv_cnt = 1.0 / (m_rows * (wcout // cout))      # 1 / (N*H*W)

    def conv3x3(z, band_ref):
        # Rows shifted by +/-1 within each image (zeros past the H border),
        # then one MXU matmul per dy tap against the precomputed band matrix
        # (the band structure supplies the zero padding along W).
        z_up = jnp.dot(sh_m, z, preferred_element_type=f32)
        z_dn = jnp.dot(sh_p, z, preferred_element_type=f32)
        return (jnp.dot(z_up, band_ref[0], preferred_element_type=f32)
                + jnp.dot(z, band_ref[1], preferred_element_type=f32)
                + jnp.dot(z_dn, band_ref[2], preferred_element_type=f32))

    def bn_fold(acc, gamma, beta):
        # Training-mode BN (batch stats, biased var) folded to one per-channel
        # scale/shift FMA.  Conv bias cancels exactly and is omitted.
        colsum = jnp.sum(acc, axis=0, keepdims=True)            # (1, W*Cout)
        colsq = jnp.sum(acc * acc, axis=0, keepdims=True)       # (1, W*Cout)
        mean_c = jnp.dot(colsum, gmat, preferred_element_type=f32) * inv_cnt
        ex2_c = jnp.dot(colsq, gmat, preferred_element_type=f32) * inv_cnt
        var_c = ex2_c - mean_c * mean_c                         # biased variance
        scale_c = gamma * lax.rsqrt(var_c + EPS)                # (1, Cout)
        shift_c = beta - mean_c * scale_c
        scale_l = jnp.dot(scale_c, smat, preferred_element_type=f32)
        shift_l = jnp.dot(shift_c, smat, preferred_element_type=f32)
        return acc * scale_l + shift_l

    # conv1 -> bn1 -> relu
    y1 = jnp.maximum(bn_fold(conv3x3(x2, w1_ref), pp[0:1], pp[1:2]), 0.0)

    # shortcut branch: 1x1 conv + BN, or identity
    if has_proj:
        scut = bn_fold(jnp.dot(x2, ws_ref[...], preferred_element_type=f32),
                       pp[4:5], pp[5:6])
    else:
        scut = x2

    # conv2 -> bn2 -> (+shortcut) -> relu
    y2 = bn_fold(conv3x3(y1, w2_ref), pp[2:3], pp[3:4])
    out_ref[...] = jnp.maximum(y2 + scut, 0.0)


# ----------------------------------------------------------------------------
# One-time parameter / constant re-layout (numpy; cache at model load)
# ----------------------------------------------------------------------------
def _band_weights_3x3(w_oihw, W):
    """(Cout, Cin, 3, 3) torch conv weight -> (3, W*Cin, W*Cout) band matrices.

    A[dy, jin*Cin + c, jout*Cout + o] = w[o, c, dy, jin - jout + 1] (0 elsewhere)
    so that row_out(i) = sum_dy row_in(i + dy - 1) @ A[dy] is the 3x3 conv with
    zero ('same') padding along W.
    """
    w = np.asarray(w_oihw, np.float32)
    Cout, Cin, KH, KW = w.shape
    A = np.zeros((KH, W * Cin, W * Cout), np.float32)
    for dy in range(KH):
        for dx in range(KW):
            tap = w[:, :, dy, dx].T                      # (Cin, Cout)
            for jout in range(W):
                jin = jout + dx - 1
                if 0 <= jin < W:
                    A[dy, jin * Cin:(jin + 1) * Cin,
                      jout * Cout:(jout + 1) * Cout] = tap
    return jnp.asarray(A)


def _blockdiag_1x1(w_oihw, W):
    """(Cout, Cin, 1, 1) 1x1 conv weight -> (W*Cin, W*Cout) block-diagonal."""
    w = np.asarray(w_oihw, np.float32)[:, :, 0, 0].T     # (Cin, Cout)
    Cin, Cout = w.shape
    B = np.zeros((W * Cin, W * Cout), np.float32)
    for j in range(W):
        B[j * Cin:(j + 1) * Cin, j * Cout:(j + 1) * Cout] = w
    return jnp.asarray(B)


def _shift_mats(N, H):
    """(2, N*H, N*H) 0/1 matrices: S[0]@z -> row i-1, S[1]@z -> row i+1,
    zeros at image borders (this supplies the zero padding along H)."""
    M = N * H
    S = np.zeros((2, M, M), np.float32)
    for n in range(N):
        for i in range(H):
            m = n * H + i
            if i > 0:
                S[0, m, m - 1] = 1.0
            if i < H - 1:
                S[1, m, m + 1] = 1.0
    return jnp.asarray(S)


def _chan_mats(W, Cout):
    """Spread (Cout, W*Cout) and gather (W*Cout, Cout) 0/1 matrices for the
    lane-interleaved channel layout lane = j*Cout + c."""
    s = np.zeros((Cout, W * Cout), np.float32)
    for j in range(W):
        for c in range(Cout):
            s[c, j * Cout + c] = 1.0
    return jnp.asarray(s), jnp.asarray(s.T)


# ----------------------------------------------------------------------------
# Public wrapper: NCHW in / NCHW out, PyTorch-layout params
# ----------------------------------------------------------------------------
def residual_block(x_nchw, params):
    """Forward pass of ResidualBlock.  Input/output: NCHW float32.

    `params`: PyTorch-layout tensors: w1/w2 (Cout,Cin,3,3), g*/be* (Cout,),
    optional ws (Cout,Cin,1,1) + gs/bes when in_channels != out_channels.
    Conv biases (b1/b2/bs) are accepted but unused: they cancel exactly under
    training-mode BatchNorm.
    """
    N, Cin, H, W = x_nchw.shape
    Cout = params["w1"].shape[0]
    has_proj = "ws" in params
    M = N * H

    w1 = _band_weights_3x3(params["w1"], W)
    w2 = _band_weights_3x3(params["w2"], W)
    sh = _shift_mats(N, H)
    smat, gmat = _chan_mats(W, Cout)
    pp_rows = [params["g1"], params["be1"], params["g2"], params["be2"]]
    if has_proj:
        pp_rows += [params["gs"], params["bes"]]
    pp = jnp.stack(pp_rows).astype(jnp.float32)

    # NCHW -> lane-dense (N*H, W*Cin) slab.
    x2 = jnp.transpose(x_nchw, (0, 2, 3, 1)).reshape(M, W * Cin)

    args = [x2, w1, w2, sh, smat, gmat, pp]
    if has_proj:
        args.append(_blockdiag_1x1(params["ws"], W))

    # TODO(synk): for large N*H or W*C, tile the row axis with a grid
    # ("arbitrary" + two-pass BN stats for dual-TC v7x), budget VMEM via
    # pltpu.CompilerParams(vmem_limit_bytes=...), and optionally feed the MXU
    # bf16 operands; at these shapes a single whole-array VMEM call is fastest.
    out2 = pl.pallas_call(
        functools.partial(_resblock_kernel, has_proj=has_proj),
        out_shape=jax.ShapeDtypeStruct((M, W * Cout), jnp.float32),
        in_specs=[_VMEM] * len(args),
        out_specs=_VMEM,
    )(*args)

    return jnp.transpose(out2.reshape(N, H, W, Cout), (0, 3, 1, 2))


# ----------------------------------------------------------------------------
# Pure-JAX reference (includes the conv biases) for correctness check
# ----------------------------------------------------------------------------
def _bn_ref(y, g, b):
    mean = jnp.mean(y, axis=(0, 2, 3), keepdims=True)
    var = jnp.mean(jnp.square(y - mean), axis=(0, 2, 3), keepdims=True)
    return ((y - mean) * lax.rsqrt(var + EPS) * g.reshape(1, -1, 1, 1)
            + b.reshape(1, -1, 1, 1))


def _conv_ref(x, w, b, padding):
    y = lax.conv_general_dilated(x, w, (1, 1), padding,
                                 dimension_numbers=("NCHW", "OIHW", "NCHW"))
    return y + b.reshape(1, -1, 1, 1)


def residual_block_ref(x, p):
    y = jax.nn.relu(_bn_ref(_conv_ref(x, p["w1"], p["b1"], "SAME"),
                            p["g1"], p["be1"]))
    y = _bn_ref(_conv_ref(y, p["w2"], p["b2"], "SAME"), p["g2"], p["be2"])
    if "ws" in p:
        s = _bn_ref(_conv_ref(x, p["ws"], p["bs"], "VALID"), p["gs"], p["bes"])
    else:
        s = x
    return jax.nn.relu(y + s)


def _make_params(key, Cin, Cout, with_proj):
    ks = jax.random.split(key, 12)
    p = {
        "w1": 0.1 * jax.random.normal(ks[0], (Cout, Cin, 3, 3), jnp.float32),
        "b1": 0.1 * jax.random.normal(ks[1], (Cout,), jnp.float32),
        "g1": 1.0 + 0.1 * jax.random.normal(ks[2], (Cout,), jnp.float32),
        "be1": 0.1 * jax.random.normal(ks[3], (Cout,), jnp.float32),
        "w2": 0.1 * jax.random.normal(ks[4], (Cout, Cout, 3, 3), jnp.float32),
        "b2": 0.1 * jax.random.normal(ks[5], (Cout,), jnp.float32),
        "g2": 1.0 + 0.1 * jax.random.normal(ks[6], (Cout,), jnp.float32),
        "be2": 0.1 * jax.random.normal(ks[7], (Cout,), jnp.float32),
    }
    if with_proj:
        p.update({
            "ws": 0.1 * jax.random.normal(ks[8], (Cout, Cin, 1, 1), jnp.float32),
            "bs": 0.1 * jax.random.normal(ks[9], (Cout,), jnp.float32),
            "gs": 1.0 + 0.1 * jax.random.normal(ks[10], (Cout,), jnp.float32),
            "bes": 0.1 * jax.random.normal(ks[11], (Cout,), jnp.float32),
        })
    return p


if __name__ == "__main__":
    N, H, W = 2, 16, 16
    k_p1, k_x1, k_p2, k_x2 = jax.random.split(jax.random.PRNGKey(0), 4)

    # Case 1: in_channels != out_channels  (1x1-conv + BN shortcut).
    p1 = _make_params(k_p1, 4, 8, with_proj=True)
    x1 = jax.random.normal(k_x1, (N, 4, H, W), jnp.float32)
    out1 = jax.block_until_ready(residual_block(x1, p1))
    ref1 = residual_block_ref(x1, p1)
    assert out1.shape == (N, 8, H, W)
    assert jnp.allclose(out1, ref1, atol=5e-4, rtol=5e-4), \
        f"proj case max abs err {jnp.max(jnp.abs(out1 - ref1))}"

    # Case 2: in_channels == out_channels  (identity shortcut).
    p2 = _make_params(k_p2, 8, 8, with_proj=False)
    x2 = jax.random.normal(k_x2, (N, 8, H, W), jnp.float32)
    out2 = jax.block_until_ready(residual_block(x2, p2))
    ref2 = residual_block_ref(x2, p2)
    assert out2.shape == (N, 8, H, W)
    assert jnp.allclose(out2, ref2, atol=5e-4, rtol=5e-4), \
        f"identity case max abs err {jnp.max(jnp.abs(out2 - ref2))}"

    print("KERNEL_OK")
</pallas_src>

<mosaic_0001>
module attributes {stable_mosaic.version = 11 : i64} {
  func.func @_resblock_kernel(%arg0: memref<32x64xf32, #tpu.memory_space<vmem>>, %arg1: memref<3x64x128xf32, #tpu.memory_space<vmem>>, %arg2: memref<3x128x128xf32, #tpu.memory_space<vmem>>, %arg3: memref<2x32x32xf32, #tpu.memory_space<vmem>>, %arg4: memref<8x128xf32, #tpu.memory_space<vmem>>, %arg5: memref<128x8xf32, #tpu.memory_space<vmem>>, %arg6: memref<6x8xf32, #tpu.memory_space<vmem>>, %arg7: memref<64x128xf32, #tpu.memory_space<vmem>>, %arg8: memref<32x128xf32, #tpu.memory_space<vmem>>) attributes {dimension_semantics = [], scalar_prefetch = 0 : i64, scratch_operands = 0 : i64, tpu.core_type = #tpu.core_type<tc>} {
    %c0 = arith.constant 0 : index
    %c0_0 = arith.constant 0 : index
    %0 = vector.load %arg0[%c0, %c0_0] : memref<32x64xf32, #tpu.memory_space<vmem>>, vector<32x64xf32>
    %c0_1 = arith.constant 0 : index
    %c0_2 = arith.constant 0 : index
    %c0_3 = arith.constant 0 : index
    %1 = vector.load %arg3[%c0_1, %c0_2, %c0_3] : memref<2x32x32xf32, #tpu.memory_space<vmem>>, vector<1x32x32xf32>
    %2 = vector.shape_cast %1 : vector<1x32x32xf32> to vector<32x32xf32>
    %c1 = arith.constant 1 : index
    %c0_4 = arith.constant 0 : index
    %c0_5 = arith.constant 0 : index
    %3 = vector.load %arg3[%c1, %c0_4, %c0_5] : memref<2x32x32xf32, #tpu.memory_space<vmem>>, vector<1x32x32xf32>
    %4 = vector.shape_cast %3 : vector<1x32x32xf32> to vector<32x32xf32>
    %c0_6 = arith.constant 0 : index
    %c0_7 = arith.constant 0 : index
    %5 = vector.load %arg4[%c0_6, %c0_7] : memref<8x128xf32, #tpu.memory_space<vmem>>, vector<8x128xf32>
    %c0_8 = arith.constant 0 : index
    %c0_9 = arith.constant 0 : index
    %6 = vector.load %arg5[%c0_8, %c0_9] : memref<128x8xf32, #tpu.memory_space<vmem>>, vector<128x8xf32>
    %c0_10 = arith.constant 0 : index
    %c0_11 = arith.constant 0 : index
    %7 = vector.load %arg6[%c0_10, %c0_11] : memref<6x8xf32, #tpu.memory_space<vmem>>, vector<6x8xf32>
    %cst = arith.constant dense<0.000000e+00> : vector<32x64xf32>
    %8 = tpu.matmul %2, %0, %cst {dimension_numbers = #tpu.dot_dimension_numbers<[1], [0], [0], [1], [0, 0, 1, 1], [], []>} : vector<32x32xf32>, vector<32x64xf32>, vector<32x64xf32> -> vector<32x64xf32>
    %cst_12 = arith.constant dense<0.000000e+00> : vector<32x64xf32>
    %9 = tpu.matmul %4, %0, %cst_12 {dimension_numbers = #tpu.dot_dimension_numbers<[1], [0], [0], [1], [0, 0, 1, 1], [], []>} : vector<32x32xf32>, vector<32x64xf32>, vector<32x64xf32> -> vector<32x64xf32>
    %c0_13 = arith.constant 0 : index
    %c0_14 = arith.constant 0 : index
    %c0_15 = arith.constant 0 : index
    %10 = vector.load %arg1[%c0_13, %c0_14, %c0_15] : memref<3x64x128xf32, #tpu.memory_space<vmem>>, vector<1x64x128xf32>
    %11 = vector.shape_cast %10 : vector<1x64x128xf32> to vector<64x128xf32>
    %cst_16 = arith.constant dense<0.000000e+00> : vector<32x128xf32>
    %12 = tpu.matmul %8, %11, %cst_16 {dimension_numbers = #tpu.dot_dimension_numbers<[1], [0], [0], [1], [0, 0, 1, 1], [], []>} : vector<32x64xf32>, vector<64x128xf32>, vector<32x128xf32> -> vector<32x128xf32>
    %c1_17 = arith.constant 1 : index
    %c0_18 = arith.constant 0 : index
    %c0_19 = arith.constant 0 : index
    %13 = vector.load %arg1[%c1_17, %c0_18, %c0_19] : memref<3x64x128xf32, #tpu.memory_space<vmem>>, vector<1x64x128xf32>
    %14 = vector.shape_cast %13 : vector<1x64x128xf32> to vector<64x128xf32>
    %cst_20 = arith.constant dense<0.000000e+00> : vector<32x128xf32>
    %15 = tpu.matmul %0, %14, %cst_20 {dimension_numbers = #tpu.dot_dimension_numbers<[1], [0], [0], [1], [0, 0, 1, 1], [], []>} : vector<32x64xf32>, vector<64x128xf32>, vector<32x128xf32> -> vector<32x128xf32>
    %16 = arith.addf %12, %15 : vector<32x128xf32>
    %c2 = arith.constant 2 : index
    %c0_21 = arith.constant 0 : index
    %c0_22 = arith.constant 0 : index
    %17 = vector.load %arg1[%c2, %c0_21, %c0_22] : memref<3x64x128xf32, #tpu.memory_space<vmem>>, vector<1x64x128xf32>
    %18 = vector.shape_cast %17 : vector<1x64x128xf32> to vector<64x128xf32>
    %cst_23 = arith.constant dense<0.000000e+00> : vector<32x128xf32>
    %19 = tpu.matmul %9, %18, %cst_23 {dimension_numbers = #tpu.dot_dimension_numbers<[1], [0], [0], [1], [0, 0, 1, 1], [], []>} : vector<32x64xf32>, vector<64x128xf32>, vector<32x128xf32> -> vector<32x128xf32>
    %20 = arith.addf %16, %19 : vector<32x128xf32>
    %21 = vector.extract_strided_slice %7 {offsets = [0, 0], sizes = [1, 8], strides = [1, 1]} : vector<6x8xf32> to vector<1x8xf32>
    %22 = vector.extract_strided_slice %7 {offsets = [1, 0], sizes = [1, 8], strides = [1, 1]} : vector<6x8xf32> to vector<1x8xf32>
    %cst_24 = arith.constant dense<0.000000e+00> : vector<128xf32>
    %23 = vector.multi_reduction <add>, %20, %cst_24 [0] : vector<32x128xf32> to vector<128xf32>
    %24 = vector.shape_cast %23 : vector<128xf32> to vector<1x128xf32>
    %25 = arith.mulf %20, %20 : vector<32x128xf32>
    %cst_25 = arith.constant dense<0.000000e+00> : vector<128xf32>
    %26 = vector.multi_reduction <add>, %25, %cst_25 [0] : vector<32x128xf32> to vector<128xf32>
    %27 = vector.shape_cast %26 : vector<128xf32> to vector<1x128xf32>
    %cst_26 = arith.constant dense<0.000000e+00> : vector<1x8xf32>
    %28 = tpu.matmul %24, %6, %cst_26 {dimension_numbers = #tpu.dot_dimension_numbers<[1], [0], [0], [1], [0, 0, 1, 1], [], []>} : vector<1x128xf32>, vector<128x8xf32>, vector<1x8xf32> -> vector<1x8xf32>
    %cst_27 = arith.constant 0.001953125 : f32
    %29 = vector.broadcast %cst_27 : f32 to vector<1x8xf32>
    %30 = arith.mulf %28, %29 : vector<1x8xf32>
    %cst_28 = arith.constant dense<0.000000e+00> : vector<1x8xf32>
    %31 = tpu.matmul %27, %6, %cst_28 {dimension_numbers = #tpu.dot_dimension_numbers<[1], [0], [0], [1], [0, 0, 1, 1], [], []>} : vector<1x128xf32>, vector<128x8xf32>, vector<1x8xf32> -> vector<1x8xf32>
    %cst_29 = arith.constant 0.001953125 : f32
    %32 = vector.broadcast %cst_29 : f32 to vector<1x8xf32>
    %33 = arith.mulf %31, %32 : vector<1x8xf32>
    %34 = arith.mulf %30, %30 : vector<1x8xf32>
    %35 = arith.subf %33, %34 : vector<1x8xf32>
    %cst_30 = arith.constant 9.99999974E-6 : f32
    %36 = vector.broadcast %cst_30 : f32 to vector<1x8xf32>
    %37 = arith.addf %35, %36 : vector<1x8xf32>
    %38 = math.rsqrt %37 : vector<1x8xf32>
    %39 = arith.mulf %21, %38 : vector<1x8xf32>
    %40 = arith.mulf %30, %39 : vector<1x8xf32>
    %41 = arith.subf %22, %40 : vector<1x8xf32>
    %cst_31 = arith.constant dense<0.000000e+00> : vector<1x128xf32>
    %42 = tpu.matmul %39, %5, %cst_31 {dimension_numbers = #tpu.dot_dimension_numbers<[1], [0], [0], [1], [0, 0, 1, 1], [], []>} : vector<1x8xf32>, vector<8x128xf32>, vector<1x128xf32> -> vector<1x128xf32>
    %cst_32 = arith.constant dense<0.000000e+00> : vector<1x128xf32>
    %43 = tpu.matmul %41, %5, %cst_32 {dimension_numbers = #tpu.dot_dimension_numbers<[1], [0], [0], [1], [0, 0, 1, 1], [], []>} : vector<1x8xf32>, vector<8x128xf32>, vector<1x128xf32> -> vector<1x128xf32>
    %44 = vector.broadcast %42 : vector<1x128xf32> to vector<32x128xf32>
    %45 = arith.mulf %20, %44 : vector<32x128xf32>
    %46 = vector.broadcast %43 : vector<1x128xf32> to vector<32x128xf32>
    %47 = arith.addf %45, %46 : vector<32x128xf32>
    %cst_33 = arith.constant 0.000000e+00 : f32
    %48 = vector.broadcast %cst_33 : f32 to vector<32x128xf32>
    %49 = arith.maximumf %47, %48 : vector<32x128xf32>
    %c0_34 = arith.constant 0 : index
    %c0_35 = arith.constant 0 : index
    %50 = vector.load %arg7[%c0_34, %c0_35] : memref<64x128xf32, #tpu.memory_space<vmem>>, vector<64x128xf32>
    %cst_36 = arith.constant dense<0.000000e+00> : vector<32x128xf32>
    %51 = tpu.matmul %0, %50, %cst_36 {dimension_numbers = #tpu.dot_dimension_numbers<[1], [0], [0], [1], [0, 0, 1, 1], [], []>} : vector<32x64xf32>, vector<64x128xf32>, vector<32x128xf32> -> vector<32x128xf32>
    %52 = vector.extract_strided_slice %7 {offsets = [4, 0], sizes = [1, 8], strides = [1, 1]} : vector<6x8xf32> to vector<1x8xf32>
    %53 = vector.extract_strided_slice %7 {offsets = [5, 0], sizes = [1, 8], strides = [1, 1]} : vector<6x8xf32> to vector<1x8xf32>
    %cst_37 = arith.constant dense<0.000000e+00> : vector<128xf32>
    %54 = vector.multi_reduction <add>, %51, %cst_37 [0] : vector<32x128xf32> to vector<128xf32>
    %55 = vector.shape_cast %54 : vector<128xf32> to vector<1x128xf32>
    %56 = arith.mulf %51, %51 : vector<32x128xf32>
    %cst_38 = arith.constant dense<0.000000e+00> : vector<128xf32>
    %57 = vector.multi_reduction <add>, %56, %cst_38 [0] : vector<32x128xf32> to vector<128xf32>
    %58 = vector.shape_cast %57 : vector<128xf32> to vector<1x128xf32>
    %cst_39 = arith.constant dense<0.000000e+00> : vector<1x8xf32>
    %59 = tpu.matmul %55, %6, %cst_39 {dimension_numbers = #tpu.dot_dimension_numbers<[1], [0], [0], [1], [0, 0, 1, 1], [], []>} : vector<1x128xf32>, vector<128x8xf32>, vector<1x8xf32> -> vector<1x8xf32>
    %cst_40 = arith.constant 0.001953125 : f32
    %60 = vector.broadcast %cst_40 : f32 to vector<1x8xf32>
    %61 = arith.mulf %59, %60 : vector<1x8xf32>
    %cst_41 = arith.constant dense<0.000000e+00> : vector<1x8xf32>
    %62 = tpu.matmul %58, %6, %cst_41 {dimension_numbers = #tpu.dot_dimension_numbers<[1], [0], [0], [1], [0, 0, 1, 1], [], []>} : vector<1x128xf32>, vector<128x8xf32>, vector<1x8xf32> -> vector<1x8xf32>
    %cst_42 = arith.constant 0.001953125 : f32
    %63 = vector.broadcast %cst_42 : f32 to vector<1x8xf32>
    %64 = arith.mulf %62, %63 : vector<1x8xf32>
    %65 = arith.mulf %61, %61 : vector<1x8xf32>
    %66 = arith.subf %64, %65 : vector<1x8xf32>
    %cst_43 = arith.constant 9.99999974E-6 : f32
    %67 = vector.broadcast %cst_43 : f32 to vector<1x8xf32>
    %68 = arith.addf %66, %67 : vector<1x8xf32>
    %69 = math.rsqrt %68 : vector<1x8xf32>
    %70 = arith.mulf %52, %69 : vector<1x8xf32>
    %71 = arith.mulf %61, %70 : vector<1x8xf32>
    %72 = arith.subf %53, %71 : vector<1x8xf32>
    %cst_44 = arith.constant dense<0.000000e+00> : vector<1x128xf32>
    %73 = tpu.matmul %70, %5, %cst_44 {dimension_numbers = #tpu.dot_dimension_numbers<[1], [0], [0], [1], [0, 0, 1, 1], [], []>} : vector<1x8xf32>, vector<8x128xf32>, vector<1x128xf32> -> vector<1x128xf32>
    %cst_45 = arith.constant dense<0.000000e+00> : vector<1x128xf32>
    %74 = tpu.matmul %72, %5, %cst_45 {dimension_numbers = #tpu.dot_dimension_numbers<[1], [0], [0], [1], [0, 0, 1, 1], [], []>} : vector<1x8xf32>, vector<8x128xf32>, vector<1x128xf32> -> vector<1x128xf32>
    %75 = vector.broadcast %73 : vector<1x128xf32> to vector<32x128xf32>
    %76 = arith.mulf %51, %75 : vector<32x128xf32>
    %77 = vector.broadcast %74 : vector<1x128xf32> to vector<32x128xf32>
    %78 = arith.addf %76, %77 : vector<32x128xf32>
    %cst_46 = arith.constant dense<0.000000e+00> : vector<32x128xf32>
    %79 = tpu.matmul %2, %49, %cst_46 {dimension_numbers = #tpu.dot_dimension_numbers<[1], [0], [0], [1], [0, 0, 1, 1], [], []>} : vector<32x32xf32>, vector<32x128xf32>, vector<32x128xf32> -> vector<32x128xf32>
    %cst_47 = arith.constant dense<0.000000e+00> : vector<32x128xf32>
    %80 = tpu.matmul %4, %49, %cst_47 {dimension_numbers = #tpu.dot_dimension_numbers<[1], [0], [0], [1], [0, 0, 1, 1], [], []>} : vector<32x32xf32>, vector<32x128xf32>, vector<32x128xf32> -> vector<32x128xf32>
    %c0_48 = arith.constant 0 : index
    %c0_49 = arith.constant 0 : index
    %c0_50 = arith.constant 0 : index
    %81 = vector.load %arg2[%c0_48, %c0_49, %c0_50] : memref<3x128x128xf32, #tpu.memory_space<vmem>>, vector<1x128x128xf32>
    %82 = vector.shape_cast %81 : vector<1x128x128xf32> to vector<128x128xf32>
    %cst_51 = arith.constant dense<0.000000e+00> : vector<32x128xf32>
    %83 = tpu.matmul %79, %82, %cst_51 {dimension_numbers = #tpu.dot_dimension_numbers<[1], [0], [0], [1], [0, 0, 1, 1], [], []>} : vector<32x128xf32>, vector<128x128xf32>, vector<32x128xf32> -> vector<32x128xf32>
    %c1_52 = arith.constant 1 : index
    %c0_53 = arith.constant 0 : index
    %c0_54 = arith.constant 0 : index
    %84 = vector.load %arg2[%c1_52, %c0_53, %c0_54] : memref<3x128x128xf32, #tpu.memory_space<vmem>>, vector<1x128x128xf32>
    %85 = vector.shape_cast %84 : vector<1x128x128xf32> to vector<128x128xf32>
    %cst_55 = arith.constant dense<0.000000e+00> : vector<32x128xf32>
    %86 = tpu.matmul %49, %85, %cst_55 {dimension_numbers = #tpu.dot_dimension_numbers<[1], [0], [0], [1], [0, 0, 1, 1], [], []>} : vector<32x128xf32>, vector<128x128xf32>, vector<32x128xf32> -> vector<32x128xf32>
    %87 = arith.addf %83, %86 : vector<32x128xf32>
    %c2_56 = arith.constant 2 : index
    %c0_57 = arith.constant 0 : index
    %c0_58 = arith.constant 0 : index
    %88 = vector.load %arg2[%c2_56, %c0_57, %c0_58] : memref<3x128x128xf32, #tpu.memory_space<vmem>>, vector<1x128x128xf32>
    %89 = vector.shape_cast %88 : vector<1x128x128xf32> to vector<128x128xf32>
    %cst_59 = arith.constant dense<0.000000e+00> : vector<32x128xf32>
    %90 = tpu.matmul %80, %89, %cst_59 {dimension_numbers = #tpu.dot_dimension_numbers<[1], [0], [0], [1], [0, 0, 1, 1], [], []>} : vector<32x128xf32>, vector<128x128xf32>, vector<32x128xf32> -> vector<32x128xf32>
    %91 = arith.addf %87, %90 : vector<32x128xf32>
    %92 = vector.extract_strided_slice %7 {offsets = [2, 0], sizes = [1, 8], strides = [1, 1]} : vector<6x8xf32> to vector<1x8xf32>
    %93 = vector.extract_strided_slice %7 {offsets = [3, 0], sizes = [1, 8], strides = [1, 1]} : vector<6x8xf32> to vector<1x8xf32>
    %cst_60 = arith.constant dense<0.000000e+00> : vector<128xf32>
    %94 = vector.multi_reduction <add>, %91, %cst_60 [0] : vector<32x128xf32> to vector<128xf32>
    %95 = vector.shape_cast %94 : vector<128xf32> to vector<1x128xf32>
    %96 = arith.mulf %91, %91 : vector<32x128xf32>
    %cst_61 = arith.constant dense<0.000000e+00> : vector<128xf32>
    %97 = vector.multi_reduction <add>, %96, %cst_61 [0] : vector<32x128xf32> to vector<128xf32>
    %98 = vector.shape_cast %97 : vector<128xf32> to vector<1x128xf32>
    %cst_62 = arith.constant dense<0.000000e+00> : vector<1x8xf32>
    %99 = tpu.matmul %95, %6, %cst_62 {dimension_numbers = #tpu.dot_dimension_numbers<[1], [0], [0], [1], [0, 0, 1, 1], [], []>} : vector<1x128xf32>, vector<128x8xf32>, vector<1x8xf32> -> vector<1x8xf32>
    %cst_63 = arith.constant 0.001953125 : f32
    %100 = vector.broadcast %cst_63 : f32 to vector<1x8xf32>
    %101 = arith.mulf %99, %100 : vector<1x8xf32>
    %cst_64 = arith.constant dense<0.000000e+00> : vector<1x8xf32>
    %102 = tpu.matmul %98, %6, %cst_64 {dimension_numbers = #tpu.dot_dimension_numbers<[1], [0], [0], [1], [0, 0, 1, 1], [], []>} : vector<1x128xf32>, vector<128x8xf32>, vector<1x8xf32> -> vector<1x8xf32>
    %cst_65 = arith.constant 0.001953125 : f32
    %103 = vector.broadcast %cst_65 : f32 to vector<1x8xf32>
    %104 = arith.mulf %102, %103 : vector<1x8xf32>
    %105 = arith.mulf %101, %101 : vector<1x8xf32>
    %106 = arith.subf %104, %105 : vector<1x8xf32>
    %cst_66 = arith.constant 9.99999974E-6 : f32
    %107 = vector.broadcast %cst_66 : f32 to vector<1x8xf32>
    %108 = arith.addf %106, %107 : vector<1x8xf32>
    %109 = math.rsqrt %108 : vector<1x8xf32>
    %110 = arith.mulf %92, %109 : vector<1x8xf32>
    %111 = arith.mulf %101, %110 : vector<1x8xf32>
    %112 = arith.subf %93, %111 : vector<1x8xf32>
    %cst_67 = arith.constant dense<0.000000e+00> : vector<1x128xf32>
    %113 = tpu.matmul %110, %5, %cst_67 {dimension_numbers = #tpu.dot_dimension_numbers<[1], [0], [0], [1], [0, 0, 1, 1], [], []>} : vector<1x8xf32>, vector<8x128xf32>, vector<1x128xf32> -> vector<1x128xf32>
    %cst_68 = arith.constant dense<0.000000e+00> : vector<1x128xf32>
    %114 = tpu.matmul %112, %5, %cst_68 {dimension_numbers = #tpu.dot_dimension_numbers<[1], [0], [0], [1], [0, 0, 1, 1], [], []>} : vector<1x8xf32>, vector<8x128xf32>, vector<1x128xf32> -> vector<1x128xf32>
    %115 = vector.broadcast %113 : vector<1x128xf32> to vector<32x128xf32>
    %116 = arith.mulf %91, %115 : vector<32x128xf32>
    %117 = vector.broadcast %114 : vector<1x128xf32> to vector<32x128xf32>
    %118 = arith.addf %116, %117 : vector<32x128xf32>
    %119 = arith.addf %118, %78 : vector<32x128xf32>
    %cst_69 = arith.constant 0.000000e+00 : f32
    %120 = vector.broadcast %cst_69 : f32 to vector<32x128xf32>
    %121 = arith.maximumf %119, %120 : vector<32x128xf32>
    %c0_70 = arith.constant 0 : index
    %c0_71 = arith.constant 0 : index
    %122 = vector.load %arg8[%c0_70, %c0_71] : memref<32x128xf32, #tpu.memory_space<vmem>>, vector<32x128xf32>
    tpu.vector_store %arg8[%c0_70, %c0_71], %121 {strides = array<i32>} : memref<32x128xf32, #tpu.memory_space<vmem>>, vector<32x128xf32>,
    return
  }
}

</mosaic_0001>

<llo_original>
// kernel: tpu_custom_call.1
$region0: #{tpu_custom_call.1}
  #allocation0 [shape = 'u32[]', space=smem, size = 0x4, offset = 0x4, fixed_abs, tag = 'smem constant byte address 0x4 - core index']
  #allocation1 [shape = 'u32[144,128]{1,0:T(1,128)}', space=vmem, size = 0x12000, scoped, tag = 'internal scratch']
  %s0 = inlined_call_operand.hbm [shape: f32[32,64], index: 0, kind: input, shape index: {}]
  %s1 = inlined_call_operand.hbm [shape: f32[3,64,128], index: 1, kind: input, shape index: {}]
  %s2 = inlined_call_operand.hbm [shape: f32[3,128,128], index: 2, kind: input, shape index: {}]
  %s3 = inlined_call_operand.vmem [shape: f32[2,32,32], index: 3, kind: input, shape index: {}]
  %s4 = inlined_call_operand.vmem [shape: f32[8,128], index: 4, kind: input, shape index: {}]
  %s5 = inlined_call_operand.vmem [shape: f32[128,8], index: 5, kind: input, shape index: {}]
  %s6 = inlined_call_operand.vmem [shape: f32[6,8], index: 6, kind: input, shape index: {}]
  %s7 = inlined_call_operand.vmem [shape: f32[64,128], index: 7, kind: input, shape index: {}]
  %s8 = inlined_call_operand.hbm [shape: f32[32,128], index: 8, kind: output, shape index: {}]
  %s9 = sld [smem:[#allocation0]]
  $region54: #{tpu_custom_call.1} parent=0
    _
  %s11 = ssub.s32 1, %s9
  %s12 = scalar_select 0, %s11, %s9
  $region1: #{tpu_custom_call.1} parent=0
    #allocation2 [shape = 'u8[16384]{0}', space=vmem, size = 0x4000, scoped, tag = 'input window, operand 0, single buffered']
    #allocation3 [shape = 's32[1]{0}', space=sflag, size = 0x4, scoped, tag = 'scoped memory for tpu_custom_call.1']
    #allocation4 [shape = 's32[1]{0}', space=sflag, size = 0x4, scoped, tag = 'scoped memory for tpu_custom_call.1']
    #allocation5 [shape = 'u8[98304]{0}', space=vmem, size = 0x18000, scoped, tag = 'input window, operand 1, single buffered']
    #allocation6 [shape = 's32[1]{0}', space=sflag, size = 0x4, scoped, tag = 'scoped memory for tpu_custom_call.1']
    #allocation7 [shape = 'u8[196608]{0}', space=vmem, size = 0x30000, scoped, tag = 'input window, operand 2, single buffered']
    #allocation8 [shape = 'u8[16384]{0}', space=vmem, size = 0x4000, scoped, tag = 'output window, operand 0, single buffered']
    %13 = vsyncpa [#allocation3], 0
    %14 = vsyncpa [#allocation6], 0
    %15 = vsyncpa [#allocation4], 0
    // Predicated region
    $region2: #{tpu_custom_call.1} parent=1 // pred_check
      _
    $region3: #{tpu_custom_call.1} parent=1 // pred_check_branch
      %17 = sbr.rel (0) target = $region5
    $region4: #{tpu_custom_call.1} parent=1 // pred_region
      %s19 = ssub.s32 512, 512
      %20 = vsyncadd [#allocation3], %s19
      %s21 = sshll.u32 [#allocation2], 4
      %s22 = int_to_ptr.vmem [resolvable:$true] %s21
      %27 = dma.hbm_to_vmem [thread:$0]  %s0, 512, %s22, [#allocation3], 128, 128, 8
    $region5: #{tpu_custom_call.1} parent=1 // pred_fallthru
      _
    // Predicated region
    $region6: #{tpu_custom_call.1} parent=1 // pred_check
      _
    $region7: #{tpu_custom_call.1} parent=1 // pred_check_branch
      %29 = sbr.rel (0) target = $region9
    $region8: #{tpu_custom_call.1} parent=1 // pred_region
      %s31 = ssub.s32 3072, 3072
      %32 = vsyncadd [#allocation6], %s31
      %s33 = sshll.u32 [#allocation5], 4
      %s34 = int_to_ptr.vmem [resolvable:$true] %s33
      %39 = dma.hbm_to_vmem [thread:$0]  %s1, 3072, %s34, [#allocation6], 128, 128, 8
    $region9: #{tpu_custom_call.1} parent=1 // pred_fallthru
      _
    // Predicated region
    $region10: #{tpu_custom_call.1} parent=1 // pred_check
      _
    $region11: #{tpu_custom_call.1} parent=1 // pred_check_branch
      %41 = sbr.rel (0) target = $region13
    $region12: #{tpu_custom_call.1} parent=1 // pred_region
      %s43 = ssub.s32 6144, 6144
      %44 = vsyncadd [#allocation6], %s43
      %s45 = sshll.u32 [#allocation7], 4
      %s46 = int_to_ptr.vmem [resolvable:$true] %s45
      %51 = dma.hbm_to_vmem [thread:$0]  %s2, 6144, %s46, [#allocation6], 128, 128, 8
    $region13: #{tpu_custom_call.1} parent=1 // pred_fallthru
      _
    // Predicated region
    $region14: #{tpu_custom_call.1} parent=1 // pred_check
      _
    $region15: #{tpu_custom_call.1} parent=1 // pred_check_branch
      %53 = sbr.rel (0) target = $region17
    $region16: #{tpu_custom_call.1} parent=1 // pred_region
      _
    $region17: #{tpu_custom_call.1} parent=1 // pred_fallthru
      _
    // Predicated region
    $region18: #{tpu_custom_call.1} parent=1 // pred_check
      _
    $region19: #{tpu_custom_call.1} parent=1 // pred_check_branch
      %55 = sbr.rel (0) target = $region21
    $region20: #{tpu_custom_call.1} parent=1 // pred_region
      _
    $region21: #{tpu_custom_call.1} parent=1 // pred_fallthru
      _
    // Predicated region
    $region22: #{tpu_custom_call.1} parent=1 // pred_check
      _
    $region23: #{tpu_custom_call.1} parent=1 // pred_check_branch
      %57 = sbr.rel (0) target = $region25
    $region24: #{tpu_custom_call.1} parent=1 // pred_region
      _
    $region25: #{tpu_custom_call.1} parent=1 // pred_fallthru
      _
    // Predicated region
    $region26: #{tpu_custom_call.1} parent=1 // pred_check
      _
    $region27: #{tpu_custom_call.1} parent=1 // pred_check_branch
      %59 = sbr.rel (0) target = $region29
    $region28: #{tpu_custom_call.1} parent=1 // pred_region
      _
    $region29: #{tpu_custom_call.1} parent=1 // pred_fallthru
      _
    // Predicated region
    $region30: #{tpu_custom_call.1} parent=1 // pred_check
      _
    $region31: #{tpu_custom_call.1} parent=1 // pred_check_branch
      %61 = sbr.rel (0) target = $region33
    $region32: #{tpu_custom_call.1} parent=1 // pred_region
      _
    $region33: #{tpu_custom_call.1} parent=1 // pred_fallthru
      _
    // Predicated region
    $region34: #{tpu_custom_call.1} parent=1 // pred_check
      _
    $region35: #{tpu_custom_call.1} parent=1 // pred_check_branch
      %63 = sbr.rel (0) target = $region37
    $region36: #{tpu_custom_call.1} parent=1 // pred_region
      %64 = dma.done [#allocation3], 512
    $region37: #{tpu_custom_call.1} parent=1 // pred_fallthru
      _
    // Predicated region
    $region38: #{tpu_custom_call.1} parent=1 // pred_check
      _
    $region39: #{tpu_custom_call.1} parent=1 // pred_check_branch
      %66 = sbr.rel (0) target = $region41
    $region40: #{tpu_custom_call.1} parent=1 // pred_region
      %67 = dma.done [#allocation6], 3072
    $region41: #{tpu_custom_call.1} parent=1 // pred_fallthru
      _
    // Predicated region
    $region42: #{tpu_custom_call.1} parent=1 // pred_check
      _
    $region43: #{tpu_custom_call.1} parent=1 // pred_check_branch
      %69 = sbr.rel (0) target = $region45
    $region44: #{tpu_custom_call.1} parent=1 // pred_region
      %70 = dma.done [#allocation6], 6144
    $region45: #{tpu_custom_call.1} parent=1 // pred_fallthru
      _
    %v71 = vld [vmem:[#allocation2] sm:$0xff]
    %v72 = vld [vmem:[#allocation2 + $0x8] sm:$0xff]
    %v73 = vld [vmem:[#allocation2 + $0x10] sm:$0xff]
    %v74 = vld [vmem:[#allocation2 + $0x18] sm:$0xff]
    %v75 = vld [vmem:[%s3] sm:$0xff]
    %v76 = vld [vmem:[%s3 + $0x8] sm:$0xff]
    %v77 = vld [vmem:[%s3 + $0x10] sm:$0xff]
    %v78 = vld [vmem:[%s3 + $0x18] sm:$0xff]
    %s79 = scalar_lea.vmem %s3, 32
    %v80 = vld [vmem:[%s79] sm:$0xff]
    %v81 = vld [vmem:[%s79 + $0x8] sm:$0xff]
    %v82 = vld [vmem:[%s79 + $0x10] sm:$0xff]
    %v83 = vld [vmem:[%s79 + $0x18] sm:$0xff]
    %v84 = vld [vmem:[%s4] sm:$0xff]
    %v85 = vld [vmem:[%s5] sm:$0xff]
    %v86 = vld [vmem:[%s5 + $0x8] sm:$0xff]
    %v87 = vld [vmem:[%s5 + $0x10] sm:$0xff]
    %v88 = vld [vmem:[%s5 + $0x18] sm:$0xff]
    %v89 = vld [vmem:[%s5 + $0x20] sm:$0xff]
    %v90 = vld [vmem:[%s5 + $0x28] sm:$0xff]
    %v91 = vld [vmem:[%s5 + $0x30] sm:$0xff]
    %v92 = vld [vmem:[%s5 + $0x38] sm:$0xff]
    %v93 = vld [vmem:[%s5 + $0x40] sm:$0xff]
    %v94 = vld [vmem:[%s5 + $0x48] sm:$0xff]
    %v95 = vld [vmem:[%s5 + $0x50] sm:$0xff]
    %v96 = vld [vmem:[%s5 + $0x58] sm:$0xff]
    %v97 = vld [vmem:[%s5 + $0x60] sm:$0xff]
    %v98 = vld [vmem:[%s5 + $0x68] sm:$0xff]
    %v99 = vld [vmem:[%s5 + $0x70] sm:$0xff]
    %v100 = vld [vmem:[%s5 + $0x78] sm:$0xff]
    %v101 = vld [vmem:[%s6] sm:$0x3f]
    %vm102 = vcmask 261120
    %v104 = vsel %vm102, %v75, 0
    %v107 = vsel %vm102, %v76, 0
    %v110 = vsel %vm102, %v77, 0
    %v113 = vsel %vm102, %v78, 0
    %115 = vmatprep.subr.mxu0 0.0
    %116 = vmatpush1.msra.mxu0 %v71
    %117 = vmatprep.subr.mxu0 0.0
    %118 = vmatpush1.msra.mxu0 %v72
    %119 = vmatprep.subr.mxu0 0.0
    %120 = vmatpush1.msra.mxu0 %v73
    %121 = vmatprep.subr.mxu0 0.0
    %122 = vmatpush1.msra.mxu0 %v74
    %123 = vmatprep.subr.mxu0 0.0
    %124 = vmatpush1.msra.mxu0 0.0
    %125 = vmatprep.subr.mxu0 0.0
    %126 = vmatpush1.msra.mxu0 0.0
    %127 = vmatprep.subr.mxu0 0.0
    %128 = vmatpush1.msra.mxu0 0.0
    %129 = vmatprep.subr.mxu0 0.0
    %130 = vmatpush1.msra.mxu0 0.0
    %131 = vmatprep.subr.mxu0 0.0
    %132 = vmatpush1.msra.mxu0 0.0
    %133 = vmatprep.subr.mxu0 0.0
    %134 = vmatpush1.msra.mxu0 0.0
    %135 = vmatprep.subr.mxu0 0.0
    %136 = vmatpush1.msra.mxu0 0.0
    %137 = vmatprep.subr.mxu0 0.0
    %138 = vmatpush1.msra.mxu0 0.0
    %139 = vmatprep.subr.mxu0 0.0
    %140 = vmatpush1.msra.mxu0 0.0
    %141 = vmatprep.subr.mxu0 0.0
    %142 = vmatpush1.msra.mxu0 0.0
    %143 = vmatprep.subr.mxu0 0.0
    %144 = vmatpush1.msra.mxu0 0.0
    %145 = vmatprep.subr.mxu0 0.0
    %146 = vmatpush1.msra.mxu0 0.0
    %147 = vmatprep.subr.mxu0 0.0
    %148 = vmatpush1.msra.mxu0 0.0
    %149 = vmatprep.subr.mxu0 0.0
    %150 = vmatpush1.msra.mxu0 0.0
    %151 = vmatprep.subr.mxu0 0.0
    %152 = vmatpush1.msra.mxu0 0.0
    %153 = vmatprep.subr.mxu0 0.0
    %154 = vmatpush1.msra.mxu0 0.0
    %155 = vmatprep.subr.mxu0 0.0
    %156 = vmatpush1.msra.mxu0 0.0
    %157 = vmatprep.subr.mxu0 0.0
    %158 = vmatpush1.msra.mxu0 0.0
    %159 = vmatprep.subr.mxu0 0.0
    %160 = vmatpush1.msra.mxu0 0.0
    %161 = vmatprep.subr.mxu0 0.0
    %162 = vmatpush1.msra.mxu0 0.0
    %163 = vmatprep.subr.mxu0 0.0
    %164 = vmatpush1.msra.mxu0 0.0
    %165 = vmatprep.subr.mxu0 0.0
    %166 = vmatpush1.msra.mxu0 0.0
    %167 = vmatprep.subr.mxu0 0.0
    %168 = vmatpush1.msra.mxu0 0.0
    %169 = vmatprep.subr.mxu0 0.0
    %170 = vmatpush1.msra.mxu0 0.0
    %171 = vmatprep.subr.mxu0 0.0
    %172 = vmatpush1.msra.mxu0 0.0
    %173 = vmatprep.subr.mxu0 0.0
    %174 = vmatpush1.msra.mxu0 0.0
    %175 = vmatprep.subr.mxu0 0.0
    %176 = vmatpush1.msra.mxu0 0.0
    %177 = vmatprep.subr.mxu0 0.0
    %178 = vmatpush1.msra.mxu0 0.0
    %179 = vmatprep.mubr.f32.mxu0 0.0
    %180 = vmatmul.mubr.f32.gmra.mrb[0].mxu0 %v104
    %v181 = vpop.f32.mrb[0].mxu0
    %v182 = vadd.f32 0.0, %v181
    %v183 = vpop.f32.mrb[0].mxu0
    %184 = vmatprep.mubr.f32.mxu0 0.0
    %185 = vmatmul.mubr.f32.gmra.mrb[0].mxu0 %v107
    %v186 = vpop.f32.mrb[0].mxu0
    %v187 = vadd.f32 0.0, %v186
    %v188 = vpop.f32.mrb[0].mxu0
    %189 = vmatprep.mubr.f32.mxu0 0.0
    %190 = vmatmul.mubr.f32.gmra.mrb[0].mxu0 %v110
    %v191 = vpop.f32.mrb[0].mxu0
    %v192 = vadd.f32 0.0, %v191
    %v193 = vpop.f32.mrb[0].mxu0
    %194 = vmatprep.mubr.f32.mxu0 0.0
    %195 = vmatmul.mubr.f32.gmra.mrb[0].mxu0 %v113
    %v196 = vpop.f32.mrb[0].mxu0
    %v197 = vadd.f32 0.0, %v196
    %v198 = vpop.f32.mrb[0].mxu0
    %199 = vdwg.mxu0
    %v201 = vsel %vm102, %v80, 0
    %v204 = vsel %vm102, %v81, 0
    %v207 = vsel %vm102, %v82, 0
    %v210 = vsel %vm102, %v83, 0
    %212 = vmatprep.subr.mxu0 0.0
    %213 = vmatpush1.msra.mxu0 %v71
    %214 = vmatprep.subr.mxu0 0.0
    %215 = vmatpush1.msra.mxu0 %v72
    %216 = vmatprep.subr.mxu0 0.0
    %217 = vmatpush1.msra.mxu0 %v73
    %218 = vmatprep.subr.mxu0 0.0
    %219 = vmatpush1.msra.mxu0 %v74
    %220 = vmatprep.subr.mxu0 0.0
    %221 = vmatpush1.msra.mxu0 0.0
    %222 = vmatprep.subr.mxu0 0.0
    %223 = vmatpush1.msra.mxu0 0.0
    %224 = vmatprep.subr.mxu0 0.0
    %225 = vmatpush1.msra.mxu0 0.0
    %226 = vmatprep.subr.mxu0 0.0
    %227 = vmatpush1.msra.mxu0 0.0
    %228 = vmatprep.subr.mxu0 0.0
    %229 = vmatpush1.msra.mxu0 0.0
    %230 = vmatprep.subr.mxu0 0.0
    %231 = vmatpush1.msra.mxu0 0.0
    %232 = vmatprep.subr.mxu0 0.0
    %233 = vmatpush1.msra.mxu0 0.0
    %234 = vmatprep.subr.mxu0 0.0
    %235 = vmatpush1.msra.mxu0 0.0
    %236 = vmatprep.subr.mxu0 0.0
    %237 = vmatpush1.msra.mxu0 0.0
    %238 = vmatprep.subr.mxu0 0.0
    %239 = vmatpush1.msra.mxu0 0.0
    %240 = vmatprep.subr.mxu0 0.0
    %241 = vmatpush1.msra.mxu0 0.0
    %242 = vmatprep.subr.mxu0 0.0
    %243 = vmatpush1.msra.mxu0 0.0
    %244 = vmatprep.subr.mxu0 0.0
    %245 = vmatpush1.msra.mxu0 0.0
    %246 = vmatprep.subr.mxu0 0.0
    %247 = vmatpush1.msra.mxu0 0.0
    %248 = vmatprep.subr.mxu0 0.0
    %249 = vmatpush1.msra.mxu0 0.0
    %250 = vmatprep.subr.mxu0 0.0
    %251 = vmatpush1.msra.mxu0 0.0
    %252 = vmatprep.subr.mxu0 0.0
    %253 = vmatpush1.msra.mxu0 0.0
    %254 = vmatprep.subr.mxu0 0.0
    %255 = vmatpush1.msra.mxu0 0.0
    %256 = vmatprep.subr.mxu0 0.0
    %257 = vmatpush1.msra.mxu0 0.0
    %258 = vmatprep.subr.mxu0 0.0
    %259 = vmatpush1.msra.mxu0 0.0
    %260 = vmatprep.subr.mxu0 0.0
    %261 = vmatpush1.msra.mxu0 0.0
    %262 = vmatprep.subr.mxu0 0.0
    %263 = vmatpush1.msra.mxu0 0.0
    %264 = vmatprep.subr.mxu0 0.0
    %265 = vmatpush1.msra.mxu0 0.0
    %266 = vmatprep.subr.mxu0 0.0
    %267 = vmatpush1.msra.mxu0 0.0
    %268 = vmatprep.subr.mxu0 0.0
    %269 = vmatpush1.msra.mxu0 0.0
    %270 = vmatprep.subr.mxu0 0.0
    %271 = vmatpush1.msra.mxu0 0.0
    %272 = vmatprep.subr.mxu0 0.0
    %273 = vmatpush1.msra.mxu0 0.0
    %274 = vmatprep.subr.mxu0 0.0
    %275 = vmatpush1.msra.mxu0 0.0
    %276 = vmatprep.mubr.f32.mxu0 0.0
    %277 = vmatmul.mubr.f32.gmra.mrb[0].mxu0 %v201
    %v278 = vpop.f32.mrb[0].mxu0
    %v279 = vadd.f32 0.0, %v278
    %v280 = vpop.f32.mrb[0].mxu0
    %281 = vmatprep.mubr.f32.mxu0 0.0
    %282 = vmatmul.mubr.f32.gmra.mrb[0].mxu0 %v204
    %v283 = vpop.f32.mrb[0].mxu0
    %v284 = vadd.f32 0.0, %v283
    %v285 = vpop.f32.mrb[0].mxu0
    %286 = vmatprep.mubr.f32.mxu0 0.0
    %287 = vmatmul.mubr.f32.gmra.mrb[0].mxu0 %v207
    %v288 = vpop.f32.mrb[0].mxu0
    %v289 = vadd.f32 0.0, %v288
    %v290 = vpop.f32.mrb[0].mxu0
    %291 = vmatprep.mubr.f32.mxu0 0.0
    %292 = vmatmul.mubr.f32.gmra.mrb[0].mxu0 %v210
    %v293 = vpop.f32.mrb[0].mxu0
    %v294 = vadd.f32 0.0, %v293
    %v295 = vpop.f32.mrb[0].mxu0
    %296 = vdwg.mxu0
    %v297 = vld [vmem:[#allocation5] sm:$0xff]
    %v298 = vld [vmem:[#allocation5 + $0x8] sm:$0xff]
    %v299 = vld [vmem:[#allocation5 + $0x10] sm:$0xff]
    %v300 = vld [vmem:[#allocation5 + $0x18] sm:$0xff]
    %v301 = vld [vmem:[#allocation5 + $0x20] sm:$0xff]
    %v302 = vld [vmem:[#allocation5 + $0x28] sm:$0xff]
    %v303 = vld [vmem:[#allocation5 + $0x30] sm:$0xff]
    %v304 = vld [vmem:[#allocation5 + $0x38] sm:$0xff]
    %s305 = scalar_lea.vmem [#allocation5], 64
    %v306 = vld [vmem:[%s305] sm:$0xff]
    %v307 = vld [vmem:[%s305 + $0x8] sm:$0xff]
    %v308 = vld [vmem:[%s305 + $0x10] sm:$0xff]
    %v309 = vld [vmem:[%s305 + $0x18] sm:$0xff]
    %v310 = vld [vmem:[%s305 + $0x20] sm:$0xff]
    %v311 = vld [vmem:[%s305 + $0x28] sm:$0xff]
    %v312 = vld [vmem:[%s305 + $0x30] sm:$0xff]
    %v313 = vld [vmem:[%s305 + $0x38] sm:$0xff]
    %vm314 = vcmask 523264
    %v316 = vsel %vm314, %v71, 0
    %v319 = vsel %vm314, %v72, 0
    %v322 = vsel %vm314, %v73, 0
    %v325 = vsel %vm314, %v74, 0
    %327 = vmatprep.subr.mxu0 0.0
    %328 = vmatpush1.msra.mxu0 %v306
    %329 = vmatprep.subr.mxu0 0.0
    %330 = vmatpush1.msra.mxu0 %v307
    %331 = vmatprep.subr.mxu0 0.0
    %332 = vmatpush1.msra.mxu0 %v308
    %333 = vmatprep.subr.mxu0 0.0
    %334 = vmatpush1.msra.mxu0 %v309
    %335 = vmatprep.subr.mxu0 0.0
    %336 = vmatpush1.msra.mxu0 %v310
    %337 = vmatprep.subr.mxu0 0.0
    %338 = vmatpush1.msra.mxu0 %v311
    %339 = vmatprep.subr.mxu0 0.0
    %340 = vmatpush1.msra.mxu0 %v312
    %341 = vmatprep.subr.mxu0 0.0
    %342 = vmatpush1.msra.mxu0 %v313
    %343 = vmatprep.subr.mxu0 0.0
    %344 = vmatpush1.msra.mxu0 0.0
    %345 = vmatprep.subr.mxu0 0.0
    %346 = vmatpush1.msra.mxu0 0.0
    %347 = vmatprep.subr.mxu0 0.0
    %348 = vmatpush1.msra.mxu0 0.0
    %349 = vmatprep.subr.mxu0 0.0
    %350 = vmatpush1.msra.mxu0 0.0
    %351 = vmatprep.subr.mxu0 0.0
    %352 = vmatpush1.msra.mxu0 0.0
    %353 = vmatprep.subr.mxu0 0.0
    %354 = vmatpush1.msra.mxu0 0.0
    %355 = vmatprep.subr.mxu0 0.0
    %356 = vmatpush1.msra.mxu0 0.0
    %357 = vmatprep.subr.mxu0 0.0
    %358 = vmatpush1.msra.mxu0 0.0
    %359 = vmatprep.subr.mxu0 0.0
    %360 = vmatpush1.msra.mxu0 0.0
    %361 = vmatprep.subr.mxu0 0.0
    %362 = vmatpush1.msra.mxu0 0.0
    %363 = vmatprep.subr.mxu0 0.0
    %364 = vmatpush1.msra.mxu0 0.0
    %365 = vmatprep.subr.mxu0 0.0
    %366 = vmatpush1.msra.mxu0 0.0
    %367 = vmatprep.subr.mxu0 0.0
    %368 = vmatpush1.msra.mxu0 0.0
    %369 = vmatprep.subr.mxu0 0.0
    %370 = vmatpush1.msra.mxu0 0.0
    %371 = vmatprep.subr.mxu0 0.0
    %372 = vmatpush1.msra.mxu0 0.0
    %373 = vmatprep.subr.mxu0 0.0
    %374 = vmatpush1.msra.mxu0 0.0
    %375 = vmatprep.subr.mxu0 0.0
    %376 = vmatpush1.msra.mxu0 0.0
    %377 = vmatprep.subr.mxu0 0.0
    %378 = vmatpush1.msra.mxu0 0.0
    %379 = vmatprep.subr.mxu0 0.0
    %380 = vmatpush1.msra.mxu0 0.0
    %381 = vmatprep.subr.mxu0 0.0
    %382 = vmatpush1.msra.mxu0 0.0
    %383 = vmatprep.subr.mxu0 0.0
    %384 = vmatpush1.msra.mxu0 0.0
    %385 = vmatprep.subr.mxu0 0.0
    %386 = vmatpush1.msra.mxu0 0.0
    %387 = vmatprep.subr.mxu0 0.0
    %388 = vmatpush1.msra.mxu0 0.0
    %389 = vmatprep.subr.mxu0 0.0
    %390 = vmatpush1.msra.mxu0 0.0
    %391 = vmatprep.mubr.f32.mxu0 0.0
    %392 = vmatmul.mubr.f32.gmra.mrb[0].mxu0 %v316
    %v393 = vpop.f32.mrb[0].mxu0
    %v394 = vadd.f32 0.0, %v393
    %v395 = vpop.f32.mrb[0].mxu0
    %396 = vmatprep.mubr.f32.mxu0 0.0
    %397 = vmatmul.mubr.f32.gmra.mrb[0].mxu0 %v319
    %v398 = vpop.f32.mrb[0].mxu0
    %v399 = vadd.f32 0.0, %v398
    %v400 = vpop.f32.mrb[0].mxu0
    %401 = vmatprep.mubr.f32.mxu0 0.0
    %402 = vmatmul.mubr.f32.gmra.mrb[0].mxu0 %v322
    %v403 = vpop.f32.mrb[0].mxu0
    %v404 = vadd.f32 0.0, %v403
    %v405 = vpop.f32.mrb[0].mxu0
    %406 = vmatprep.mubr.f32.mxu0 0.0
    %407 = vmatmul.mubr.f32.gmra.mrb[0].mxu0 %v325
    %v408 = vpop.f32.mrb[0].mxu0
    %v409 = vadd.f32 0.0, %v408
    %v410 = vpop.f32.mrb[0].mxu0
    %411 = vdwg.mxu0
    %v413 = vsel %vm314, %v182, 0
    %v416 = vsel %vm314, %v187, 0
    %v419 = vsel %vm314, %v192, 0
    %v422 = vsel %vm314, %v197, 0
    %424 = vmatprep.subr.mxu0 0.0
    %425 = vmatpush1.msra.mxu0 %v297
    %426 = vmatprep.subr.mxu0 0.0
    %427 = vmatpush1.msra.mxu0 %v298
    %428 = vmatprep.subr.mxu0 0.0
    %429 = vmatpush1.msra.mxu0 %v299
    %430 = vmatprep.subr.mxu0 0.0
    %431 = vmatpush1.msra.mxu0 %v300
    %432 = vmatprep.subr.mxu0 0.0
    %433 = vmatpush1.msra.mxu0 %v301
    %434 = vmatprep.subr.mxu0 0.0
    %435 = vmatpush1.msra.mxu0 %v302
    %436 = vmatprep.subr.mxu0 0.0
    %437 = vmatpush1.msra.mxu0 %v303
    %438 = vmatprep.subr.mxu0 0.0
    %439 = vmatpush1.msra.mxu0 %v304
    %440 = vmatprep.subr.mxu0 0.0
    %441 = vmatpush1.msra.mxu0 0.0
    %442 = vmatprep.subr.mxu0 0.0
    %443 = vmatpush1.msra.mxu0 0.0
    %444 = vmatprep.subr.mxu0 0.0
    %445 = vmatpush1.msra.mxu0 0.0
    %446 = vmatprep.subr.mxu0 0.0
    %447 = vmatpush1.msra.mxu0 0.0
    %448 = vmatprep.subr.mxu0 0.0
    %449 = vmatpush1.msra.mxu0 0.0
    %450 = vmatprep.subr.mxu0 0.0
    %451 = vmatpush1.msra.mxu0 0.0
    %452 = vmatprep.subr.mxu0 0.0
    %453 = vmatpush1.msra.mxu0 0.0
    %454 = vmatprep.subr.mxu0 0.0
    %455 = vmatpush1.msra.mxu0 0.0
    %456 = vmatprep.subr.mxu0 0.0
    %457 = vmatpush1.msra.mxu0 0.0
    %458 = vmatprep.subr.mxu0 0.0
    %459 = vmatpush1.msra.mxu0 0.0
    %460 = vmatprep.subr.mxu0 0.0
    %461 = vmatpush1.msra.mxu0 0.0
    %462 = vmatprep.subr.mxu0 0.0
    %463 = vmatpush1.msra.mxu0 0.0
    %464 = vmatprep.subr.mxu0 0.0
    %465 = vmatpush1.msra.mxu0 0.0
    %466 = vmatprep.subr.mxu0 0.0
    %467 = vmatpush1.msra.mxu0 0.0
    %468 = vmatprep.subr.mxu0 0.0
    %469 = vmatpush1.msra.mxu0 0.0
    %470 = vmatprep.subr.mxu0 0.0
    %471 = vmatpush1.msra.mxu0 0.0
    %472 = vmatprep.subr.mxu0 0.0
    %473 = vmatpush1.msra.mxu0 0.0
    %474 = vmatprep.subr.mxu0 0.0
    %475 = vmatpush1.msra.mxu0 0.0
    %476 = vmatprep.subr.mxu0 0.0
    %477 = vmatpush1.msra.mxu0 0.0
    %478 = vmatprep.subr.mxu0 0.0
    %479 = vmatpush1.msra.mxu0 0.0
    %480 = vmatprep.subr.mxu0 0.0
    %481 = vmatpush1.msra.mxu0 0.0
    %482 = vmatprep.subr.mxu0 0.0
    %483 = vmatpush1.msra.mxu0 0.0
    %484 = vmatprep.subr.mxu0 0.0
    %485 = vmatpush1.msra.mxu0 0.0
    %486 = vmatprep.subr.mxu0 0.0
    %487 = vmatpush1.msra.mxu0 0.0
    %488 = vmatprep.mubr.f32.mxu0 0.0
    %489 = vmatmul.mubr.f32.gmra.mrb[0].mxu0 %v413
    %v490 = vpop.f32.mrb[0].mxu0
    %v491 = vadd.f32 %v394, %v490
    %v492 = vpop.f32.mrb[0].mxu0
    %493 = vmatprep.mubr.f32.mxu0 0.0
    %494 = vmatmul.mubr.f32.gmra.mrb[0].mxu0 %v416
    %v495 = vpop.f32.mrb[0].mxu0
    %v496 = vadd.f32 %v399, %v495
    %v497 = vpop.f32.mrb[0].mxu0
    %498 = vmatprep.mubr.f32.mxu0 0.0
    %499 = vmatmul.mubr.f32.gmra.mrb[0].mxu0 %v419
    %v500 = vpop.f32.mrb[0].mxu0
    %v501 = vadd.f32 %v404, %v500
    %v502 = vpop.f32.mrb[0].mxu0
    %503 = vmatprep.mubr.f32.mxu0 0.0
    %504 = vmatmul.mubr.f32.gmra.mrb[0].mxu0 %v422
    %v505 = vpop.f32.mrb[0].mxu0
    %v506 = vadd.f32 %v409, %v505
    %v507 = vpop.f32.mrb[0].mxu0
    %508 = vdwg.mxu0
    %s509 = scalar_lea.vmem [#allocation5], 128
    %v510 = vld [vmem:[%s509] sm:$0xff]
    %v511 = vld [vmem:[%s509 + $0x8] sm:$0xff]
    %v512 = vld [vmem:[%s509 + $0x10] sm:$0xff]
    %v513 = vld [vmem:[%s509 + $0x18] sm:$0xff]
    %v514 = vld [vmem:[%s509 + $0x20] sm:$0xff]
    %v515 = vld [vmem:[%s509 + $0x28] sm:$0xff]
    %v516 = vld [vmem:[%s509 + $0x30] sm:$0xff]
    %v517 = vld [vmem:[%s509 + $0x38] sm:$0xff]
    %v519 = vsel %vm314, %v279, 0
    %v522 = vsel %vm314, %v284, 0
    %v525 = vsel %vm314, %v289, 0
    %v528 = vsel %vm314, %v294, 0
    %530 = vmatprep.subr.mxu0 0.0
    %531 = vmatpush1.msra.mxu0 %v510
    %532 = vmatprep.subr.mxu0 0.0
    %533 = vmatpush1.msra.mxu0 %v511
    %534 = vmatprep.subr.mxu0 0.0
    %535 = vmatpush1.msra.mxu0 %v512
    %536 = vmatprep.subr.mxu0 0.0
    %537 = vmatpush1.msra.mxu0 %v513
    %538 = vmatprep.subr.mxu0 0.0
    %539 = vmatpush1.msra.mxu0 %v514
    %540 = vmatprep.subr.mxu0 0.0
    %541 = vmatpush1.msra.mxu0 %v515
    %542 = vmatprep.subr.mxu0 0.0
    %543 = vmatpush1.msra.mxu0 %v516
    %544 = vmatprep.subr.mxu0 0.0
    %545 = vmatpush1.msra.mxu0 %v517
    %546 = vmatprep.subr.mxu0 0.0
    %547 = vmatpush1.msra.mxu0 0.0
    %548 = vmatprep.subr.mxu0 0.0
    %549 = vmatpush1.msra.mxu0 0.0
    %550 = vmatprep.subr.mxu0 0.0
    %551 = vmatpush1.msra.mxu0 0.0
    %552 = vmatprep.subr.mxu0 0.0
    %553 = vmatpush1.msra.mxu0 0.0
    %554 = vmatprep.subr.mxu0 0.0
    %555 = vmatpush1.msra.mxu0 0.0
    %556 = vmatprep.subr.mxu0 0.0
    %557 = vmatpush1.msra.mxu0 0.0
    %558 = vmatprep.subr.mxu0 0.0
    %559 = vmatpush1.msra.mxu0 0.0
    %560 = vmatprep.subr.mxu0 0.0
    %561 = vmatpush1.msra.mxu0 0.0
    %562 = vmatprep.subr.mxu0 0.0
    %563 = vmatpush1.msra.mxu0 0.0
    %564 = vmatprep.subr.mxu0 0.0
    %565 = vmatpush1.msra.mxu0 0.0
    %566 = vmatprep.subr.mxu0 0.0
    %567 = vmatpush1.msra.mxu0 0.0
    %568 = vmatprep.subr.mxu0 0.0
    %569 = vmatpush1.msra.mxu0 0.0
    %570 = vmatprep.subr.mxu0 0.0
    %571 = vmatpush1.msra.mxu0 0.0
    %572 = vmatprep.subr.mxu0 0.0
    %573 = vmatpush1.msra.mxu0 0.0
    %574 = vmatprep.subr.mxu0 0.0
    %575 = vmatpush1.msra.mxu0 0.0
    %576 = vmatprep.subr.mxu0 0.0
    %577 = vmatpush1.msra.mxu0 0.0
    %578 = vmatprep.subr.mxu0 0.0
    %579 = vmatpush1.msra.mxu0 0.0
    %580 = vmatprep.subr.mxu0 0.0
    %581 = vmatpush1.msra.mxu0 0.0
    %582 = vmatprep.subr.mxu0 0.0
    %583 = vmatpush1.msra.mxu0 0.0
    %584 = vmatprep.subr.mxu0 0.0
    %585 = vmatpush1.msra.mxu0 0.0
    %586 = vmatprep.subr.mxu0 0.0
    %587 = vmatpush1.msra.mxu0 0.0
    %588 = vmatprep.subr.mxu0 0.0
    %589 = vmatpush1.msra.mxu0 0.0
    %590 = vmatprep.subr.mxu0 0.0
    %591 = vmatpush1.msra.mxu0 0.0
    %592 = vmatprep.subr.mxu0 0.0
    %593 = vmatpush1.msra.mxu0 0.0
    %594 = vmatprep.mubr.f32.mxu0 0.0
    %595 = vmatmul.mubr.f32.gmra.mrb[0].mxu0 %v519
    %v596 = vpop.f32.mrb[0].mxu0
    %v597 = vadd.f32 0.0, %v596
    %v598 = vpop.f32.mrb[0].mxu0
    %599 = vmatprep.mubr.f32.mxu0 0.0
    %600 = vmatmul.mubr.f32.gmra.mrb[0].mxu0 %v522
    %v601 = vpop.f32.mrb[0].mxu0
    %v602 = vadd.f32 0.0, %v601
    %v603 = vpop.f32.mrb[0].mxu0
    %604 = vmatprep.mubr.f32.mxu0 0.0
    %605 = vmatmul.mubr.f32.gmra.mrb[0].mxu0 %v525
    %v606 = vpop.f32.mrb[0].mxu0
    %v607 = vadd.f32 0.0, %v606
    %v608 = vpop.f32.mrb[0].mxu0
    %609 = vmatprep.mubr.f32.mxu0 0.0
    %610 = vmatmul.mubr.f32.gmra.mrb[0].mxu0 %v528
    %v611 = vpop.f32.mrb[0].mxu0
    %v612 = vadd.f32 0.0, %v611
    %v613 = vpop.f32.mrb[0].mxu0
    %614 = vdwg.mxu0
    %v615 = vadd.f32 %v491, %v597
    %v616 = vadd.f32 %v496, %v602
    %v617 = vadd.f32 %v501, %v607
    %v618 = vadd.f32 %v506, %v612
    %v619 = vadd.f32 %v615, %v616
    %v620 = vadd.f32 %v619, %v617
    %v621 = vadd.f32 %v620, %v618
    %v622 = vrot.slane %v621, 4
    %v623 = vadd.f32 %v621, %v622
    %v624 = vrot.slane %v623, 2
    %v625 = vadd.f32 %v623, %v624
    %v626 = vrot.slane %v625, 1
    %v627 = vadd.f32 %v625, %v626
    %v628 = vmul.f32 %v615, %v615
    %v629 = vmul.f32 %v616, %v616
    %v630 = vmul.f32 %v617, %v617
    %v631 = vmul.f32 %v618, %v618
    %v632 = vadd.f32 %v628, %v629
    %v633 = vadd.f32 %v632, %v630
    %v634 = vadd.f32 %v633, %v631
    %v635 = vrot.slane %v634, 4
    %v636 = vadd.f32 %v634, %v635
    %v637 = vrot.slane %v636, 2
    %v638 = vadd.f32 %v636, %v637
    %v639 = vrot.slane %v638, 1
    %v640 = vadd.f32 %v638, %v639
    %641 = vmatprep.subr.mxu0 0.0
    %642 = vmatpush1.msra.mxu0 %v85
    %643 = vmatprep.subr.mxu0 0.0
    %644 = vmatpush1.msra.mxu0 %v86
    %645 = vmatprep.subr.mxu0 0.0
    %646 = vmatpush1.msra.mxu0 %v87
    %647 = vmatprep.subr.mxu0 0.0
    %648 = vmatpush1.msra.mxu0 %v88
    %649 = vmatprep.subr.mxu0 0.0
    %650 = vmatpush1.msra.mxu0 %v89
    %651 = vmatprep.subr.mxu0 0.0
    %652 = vmatpush1.msra.mxu0 %v90
    %653 = vmatprep.subr.mxu0 0.0
    %654 = vmatpush1.msra.mxu0 %v91
    %655 = vmatprep.subr.mxu0 0.0
    %656 = vmatpush1.msra.mxu0 %v92
    %657 = vmatprep.subr.mxu0 0.0
    %658 = vmatpush1.msra.mxu0 %v93
    %659 = vmatprep.subr.mxu0 0.0
    %660 = vmatpush1.msra.mxu0 %v94
    %661 = vmatprep.subr.mxu0 0.0
    %662 = vmatpush1.msra.mxu0 %v95
    %663 = vmatprep.subr.mxu0 0.0
    %664 = vmatpush1.msra.mxu0 %v96
    %665 = vmatprep.subr.mxu0 0.0
    %666 = vmatpush1.msra.mxu0 %v97
    %667 = vmatprep.subr.mxu0 0.0
    %668 = vmatpush1.msra.mxu0 %v98
    %669 = vmatprep.subr.mxu0 0.0
    %670 = vmatpush1.msra.mxu0 %v99
    %671 = vmatprep.subr.mxu0 0.0
    %672 = vmatpush1.msra.mxu0 %v100
    %673 = vmatprep.subr.mxu0 0.0
    %674 = vmatpush1.msra.mxu0 0.0
    %675 = vmatprep.subr.mxu0 0.0
    %676 = vmatpush1.msra.mxu0 0.0
    %677 = vmatprep.subr.mxu0 0.0
    %678 = vmatpush1.msra.mxu0 0.0
    %679 = vmatprep.subr.mxu0 0.0
    %680 = vmatpush1.msra.mxu0 0.0
    %681 = vmatprep.subr.mxu0 0.0
    %682 = vmatpush1.msra.mxu0 0.0
    %683 = vmatprep.subr.mxu0 0.0
    %684 = vmatpush1.msra.mxu0 0.0
    %685 = vmatprep.subr.mxu0 0.0
    %686 = vmatpush1.msra.mxu0 0.0
    %687 = vmatprep.subr.mxu0 0.0
    %688 = vmatpush1.msra.mxu0 0.0
    %689 = vmatprep.subr.mxu0 0.0
    %690 = vmatpush1.msra.mxu0 0.0
    %691 = vmatprep.subr.mxu0 0.0
    %692 = vmatpush1.msra.mxu0 0.0
    %693 = vmatprep.subr.mxu0 0.0
    %694 = vmatpush1.msra.mxu0 0.0
    %695 = vmatprep.subr.mxu0 0.0
    %696 = vmatpush1.msra.mxu0 0.0
    %697 = vmatprep.subr.mxu0 0.0
    %698 = vmatpush1.msra.mxu0 0.0
    %699 = vmatprep.subr.mxu0 0.0
    %700 = vmatpush1.msra.mxu0 0.0
    %701 = vmatprep.subr.mxu0 0.0
    %702 = vmatpush1.msra.mxu0 0.0
    %703 = vmatprep.subr.mxu0 0.0
    %704 = vmatpush1.msra.mxu0 0.0
    %705 = vmatprep.mubr.f32.mxu0 0.0
    %706 = vmatmul.mubr.f32.gmra.mrb[0].mxu0 %v627
    %v707 = vpop.f32.mrb[0].mxu0
    %v708 = vadd.f32 0.0, %v707
    %v709 = vpop.f32.mrb[0].mxu0
    %710 = vdwg.mxu0
    %v711 = vmul.f32 %v708, 0.001953125
    %712 = vmatprep.subr.mxu0 0.0
    %713 = vmatpush1.msra.mxu0 %v85
    %714 = vmatprep.subr.mxu0 0.0
    %715 = vmatpush1.msra.mxu0 %v86
    %716 = vmatprep.subr.mxu0 0.0
    %717 = vmatpush1.msra.mxu0 %v87
    %718 = vmatprep.subr.mxu0 0.0
    %719 = vmatpush1.msra.mxu0 %v88
    %720 = vmatprep.subr.mxu0 0.0
    %721 = vmatpush1.msra.mxu0 %v89
    %722 = vmatprep.subr.mxu0 0.0
    %723 = vmatpush1.msra.mxu0 %v90
    %724 = vmatprep.subr.mxu0 0.0
    %725 = vmatpush1.msra.mxu0 %v91
    %726 = vmatprep.subr.mxu0 0.0
    %727 = vmatpush1.msra.mxu0 %v92
    %728 = vmatprep.subr.mxu0 0.0
    %729 = vmatpush1.msra.mxu0 %v93
    %730 = vmatprep.subr.mxu0 0.0
    %731 = vmatpush1.msra.mxu0 %v94
    %732 = vmatprep.subr.mxu0 0.0
    %733 = vmatpush1.msra.mxu0 %v95
    %734 = vmatprep.subr.mxu0 0.0
    %735 = vmatpush1.msra.mxu0 %v96
    %736 = vmatprep.subr.mxu0 0.0
    %737 = vmatpush1.msra.mxu0 %v97
    %738 = vmatprep.subr.mxu0 0.0
    %739 = vmatpush1.msra.mxu0 %v98
    %740 = vmatprep.subr.mxu0 0.0
    %741 = vmatpush1.msra.mxu0 %v99
    %742 = vmatprep.subr.mxu0 0.0
    %743 = vmatpush1.msra.mxu0 %v100
    %744 = vmatprep.subr.mxu0 0.0
    %745 = vmatpush1.msra.mxu0 0.0
    %746 = vmatprep.subr.mxu0 0.0
    %747 = vmatpush1.msra.mxu0 0.0
    %748 = vmatprep.subr.mxu0 0.0
    %749 = vmatpush1.msra.mxu0 0.0
    %750 = vmatprep.subr.mxu0 0.0
    %751 = vmatpush1.msra.mxu0 0.0
    %752 = vmatprep.subr.mxu0 0.0
    %753 = vmatpush1.msra.mxu0 0.0
    %754 = vmatprep.subr.mxu0 0.0
    %755 = vmatpush1.msra.mxu0 0.0
    %756 = vmatprep.subr.mxu0 0.0
    %757 = vmatpush1.msra.mxu0 0.0
    %758 = vmatprep.subr.mxu0 0.0
    %759 = vmatpush1.msra.mxu0 0.0
    %760 = vmatprep.subr.mxu0 0.0
    %761 = vmatpush1.msra.mxu0 0.0
    %762 = vmatprep.subr.mxu0 0.0
    %763 = vmatpush1.msra.mxu0 0.0
    %764 = vmatprep.subr.mxu0 0.0
    %765 = vmatpush1.msra.mxu0 0.0
    %766 = vmatprep.subr.mxu0 0.0
    %767 = vmatpush1.msra.mxu0 0.0
    %768 = vmatprep.subr.mxu0 0.0
    %769 = vmatpush1.msra.mxu0 0.0
    %770 = vmatprep.subr.mxu0 0.0
    %771 = vmatpush1.msra.mxu0 0.0
    %772 = vmatprep.subr.mxu0 0.0
    %773 = vmatpush1.msra.mxu0 0.0
    %774 = vmatprep.subr.mxu0 0.0
    %775 = vmatpush1.msra.mxu0 0.0
    %776 = vmatprep.mubr.f32.mxu0 0.0
    %777 = vmatmul.mubr.f32.gmra.mrb[0].mxu0 %v640
    %v778 = vpop.f32.mrb[0].mxu0
    %v779 = vadd.f32 0.0, %v778
    %v780 = vpop.f32.mrb[0].mxu0
    %781 = vdwg.mxu0
    %v782 = vmul.f32 %v779, 0.001953125
    %v783 = vmul.f32 %v711, %v711
    %v784 = vsub.f32 %v782, %v783
    %v785 = vadd.f32 %v784, 1e-05
    %v786 = vrsqrt.pop %v785
    %v787 = vmul.f32 %v101, %v786
    %v788 = vmul.f32 %v711, %v787
    %v790 = vrot.slane %v788, 7
    %v792 = vsub.f32 %v101, %v790
    %vm793 = vcmask 64512
    %v795 = vsel %vm793, %v787, 0
    %797 = vmatprep.subr.mxu0 0.0
    %798 = vmatpush1.msra.mxu0 %v84
    %799 = vmatprep.subr.mxu0 0.0
    %800 = vmatpush1.msra.mxu0 0.0
    %801 = vmatprep.subr.mxu0 0.0
    %802 = vmatpush1.msra.mxu0 0.0
    %803 = vmatprep.subr.mxu0 0.0
    %804 = vmatpush1.msra.mxu0 0.0
    %805 = vmatprep.subr.mxu0 0.0
    %806 = vmatpush1.msra.mxu0 0.0
    %807 = vmatprep.subr.mxu0 0.0
    %808 = vmatpush1.msra.mxu0 0.0
    %809 = vmatprep.subr.mxu0 0.0
    %810 = vmatpush1.msra.mxu0 0.0
    %811 = vmatprep.subr.mxu0 0.0
    %812 = vmatpush1.msra.mxu0 0.0
    %813 = vmatprep.subr.mxu0 0.0
    %814 = vmatpush1.msra.mxu0 0.0
    %815 = vmatprep.subr.mxu0 0.0
    %816 = vmatpush1.msra.mxu0 0.0
    %817 = vmatprep.subr.mxu0 0.0
    %818 = vmatpush1.msra.mxu0 0.0
    %819 = vmatprep.subr.mxu0 0.0
    %820 = vmatpush1.msra.mxu0 0.0
    %821 = vmatprep.subr.mxu0 0.0
    %822 = vmatpush1.msra.mxu0 0.0
    %823 = vmatprep.subr.mxu0 0.0
    %824 = vmatpush1.msra.mxu0 0.0
    %825 = vmatprep.subr.mxu0 0.0
    %826 = vmatpush1.msra.mxu0 0.0
    %827 = vmatprep.subr.mxu0 0.0
    %828 = vmatpush1.msra.mxu0 0.0
    %829 = vmatprep.subr.mxu0 0.0
    %830 = vmatpush1.msra.mxu0 0.0
    %831 = vmatprep.subr.mxu0 0.0
    %832 = vmatpush1.msra.mxu0 0.0
    %833 = vmatprep.subr.mxu0 0.0
    %834 = vmatpush1.msra.mxu0 0.0
    %835 = vmatprep.subr.mxu0 0.0
    %836 = vmatpush1.msra.mxu0 0.0
    %837 = vmatprep.subr.mxu0 0.0
    %838 = vmatpush1.msra.mxu0 0.0
    %839 = vmatprep.subr.mxu0 0.0
    %840 = vmatpush1.msra.mxu0 0.0
    %841 = vmatprep.subr.mxu0 0.0
    %842 = vmatpush1.msra.mxu0 0.0
    %843 = vmatprep.subr.mxu0 0.0
    %844 = vmatpush1.msra.mxu0 0.0
    %845 = vmatprep.subr.mxu0 0.0
    %846 = vmatpush1.msra.mxu0 0.0
    %847 = vmatprep.subr.mxu0 0.0
    %848 = vmatpush1.msra.mxu0 0.0
    %849 = vmatprep.subr.mxu0 0.0
    %850 = vmatpush1.msra.mxu0 0.0
    %851 = vmatprep.subr.mxu0 0.0
    %852 = vmatpush1.msra.mxu0 0.0
    %853 = vmatprep.subr.mxu0 0.0
    %854 = vmatpush1.msra.mxu0 0.0
    %855 = vmatprep.subr.mxu0 0.0
    %856 = vmatpush1.msra.mxu0 0.0
    %857 = vmatprep.subr.mxu0 0.0
    %858 = vmatpush1.msra.mxu0 0.0
    %859 = vmatprep.subr.mxu0 0.0
    %860 = vmatpush1.msra.mxu0 0.0
    %861 = vmatprep.mubr.f32.mxu0 0.0
    %862 = vmatmul.mubr.f32.gmra.mrb[0].mxu0 %v795
    %v863 = vpop.f32.mrb[0].mxu0
    %v864 = vadd.f32 0.0, %v863
    %v865 = vpop.f32.mrb[0].mxu0
    %866 = vdwg.mxu0
    %v868 = vrot.slane %v792, 1
    %v869 = vsel %vm793, %v868, 0
    %871 = vmatprep.subr.mxu0 0.0
    %872 = vmatpush1.msra.mxu0 %v84
    %873 = vmatprep.subr.mxu0 0.0
    %874 = vmatpush1.msra.mxu0 0.0
    %875 = vmatprep.subr.mxu0 0.0
    %876 = vmatpush1.msra.mxu0 0.0
    %877 = vmatprep.subr.mxu0 0.0
    %878 = vmatpush1.msra.mxu0 0.0
    %879 = vmatprep.subr.mxu0 0.0
    %880 = vmatpush1.msra.mxu0 0.0
    %881 = vmatprep.subr.mxu0 0.0
    %882 = vmatpush1.msra.mxu0 0.0
    %883 = vmatprep.subr.mxu0 0.0
    %884 = vmatpush1.msra.mxu0 0.0
    %885 = vmatprep.subr.mxu0 0.0
    %886 = vmatpush1.msra.mxu0 0.0
    %887 = vmatprep.subr.mxu0 0.0
    %888 = vmatpush1.msra.mxu0 0.0
    %889 = vmatprep.subr.mxu0 0.0
    %890 = vmatpush1.msra.mxu0 0.0
    %891 = vmatprep.subr.mxu0 0.0
    %892 = vmatpush1.msra.mxu0 0.0
    %893 = vmatprep.subr.mxu0 0.0
    %894 = vmatpush1.msra.mxu0 0.0
    %895 = vmatprep.subr.mxu0 0.0
    %896 = vmatpush1.msra.mxu0 0.0
    %897 = vmatprep.subr.mxu0 0.0
    %898 = vmatpush1.msra.mxu0 0.0
    %899 = vmatprep.subr.mxu0 0.0
    %900 = vmatpush1.msra.mxu0 0.0
    %901 = vmatprep.subr.mxu0 0.0
    %902 = vmatpush1.msra.mxu0 0.0
    %903 = vmatprep.subr.mxu0 0.0
    %904 = vmatpush1.msra.mxu0 0.0
    %905 = vmatprep.subr.mxu0 0.0
    %906 = vmatpush1.msra.mxu0 0.0
    %907 = vmatprep.subr.mxu0 0.0
    %908 = vmatpush1.msra.mxu0 0.0
    %909 = vmatprep.subr.mxu0 0.0
    %910 = vmatpush1.msra.mxu0 0.0
    %911 = vmatprep.subr.mxu0 0.0
    %912 = vmatpush1.msra.mxu0 0.0
    %913 = vmatprep.subr.mxu0 0.0
    %914 = vmatpush1.msra.mxu0 0.0
    %915 = vmatprep.subr.mxu0 0.0
    %916 = vmatpush1.msra.mxu0 0.0
    %917 = vmatprep.subr.mxu0 0.0
    %918 = vmatpush1.msra.mxu0 0.0
    %919 = vmatprep.subr.mxu0 0.0
    %920 = vmatpush1.msra.mxu0 0.0
    %921 = vmatprep.subr.mxu0 0.0
    %922 = vmatpush1.msra.mxu0 0.0
    %923 = vmatprep.subr.mxu0 0.0
    %924 = vmatpush1.msra.mxu0 0.0
    %925 = vmatprep.subr.mxu0 0.0
    %926 = vmatpush1.msra.mxu0 0.0
    %927 = vmatprep.subr.mxu0 0.0
    %928 = vmatpush1.msra.mxu0 0.0
    %929 = vmatprep.subr.mxu0 0.0
    %930 = vmatpush1.msra.mxu0 0.0
    %931 = vmatprep.subr.mxu0 0.0
    %932 = vmatpush1.msra.mxu0 0.0
    %933 = vmatprep.subr.mxu0 0.0
    %934 = vmatpush1.msra.mxu0 0.0
    %935 = vmatprep.mubr.f32.mxu0 0.0
    %936 = vmatmul.mubr.f32.gmra.mrb[0].mxu0 %v869
    %v937 = vpop.f32.mrb[0].mxu0
    %v938 = vadd.f32 0.0, %v937
    %v939 = vpop.f32.mrb[0].mxu0
    %940 = vdwg.mxu0
    %v941 = vlaneseq
    %v942 = vshrl.u32 %v941, 7
    %v943 = vsub.s32 0, %v942
    %v944 = vrot.slane %v864, %v943
    %v945 = vmul.f32 %v615, %v944
    %v946 = vmul.f32 %v616, %v944
    %v947 = vmul.f32 %v617, %v944
    %v948 = vmul.f32 %v618, %v944
    %v949 = vlaneseq
    %v950 = vshrl.u32 %v949, 7
    %v951 = vsub.s32 0, %v950
    %v952 = vrot.slane %v938, %v951
    %v953 = vadd.f32 %v945, %v952
    %v954 = vadd.f32 %v946, %v952
    %v955 = vadd.f32 %v947, %v952
    %v956 = vadd.f32 %v948, %v952
    %v957 = vmax.f32 %v953, 0.0
    %v958 = vmax.f32 %v954, 0.0
    %v959 = vmax.f32 %v955, 0.0
    %v960 = vmax.f32 %v956, 0.0
    %v961 = vld [vmem:[%s7] sm:$0xff]
    %v962 = vld [vmem:[%s7 + $0x8] sm:$0xff]
    %v963 = vld [vmem:[%s7 + $0x10] sm:$0xff]
    %v964 = vld [vmem:[%s7 + $0x18] sm:$0xff]
    %v965 = vld [vmem:[%s7 + $0x20] sm:$0xff]
    %v966 = vld [vmem:[%s7 + $0x28] sm:$0xff]
    %v967 = vld [vmem:[%s7 + $0x30] sm:$0xff]
    %v968 = vld [vmem:[%s7 + $0x38] sm:$0xff]
    %969 = vmatprep.subr.mxu0 0.0
    %970 = vmatpush1.msra.mxu0 %v961
    %971 = vmatprep.subr.mxu0 0.0
    %972 = vmatpush1.msra.mxu0 %v962
    %973 = vmatprep.subr.mxu0 0.0
    %974 = vmatpush1.msra.mxu0 %v963
    %975 = vmatprep.subr.mxu0 0.0
    %976 = vmatpush1.msra.mxu0 %v964
    %977 = vmatprep.subr.mxu0 0.0
    %978 = vmatpush1.msra.mxu0 %v965
    %979 = vmatprep.subr.mxu0 0.0
    %980 = vmatpush1.msra.mxu0 %v966
    %981 = vmatprep.subr.mxu0 0.0
    %982 = vmatpush1.msra.mxu0 %v967
    %983 = vmatprep.subr.mxu0 0.0
    %984 = vmatpush1.msra.mxu0 %v968
    %985 = vmatprep.subr.mxu0 0.0
    %986 = vmatpush1.msra.mxu0 0.0
    %987 = vmatprep.subr.mxu0 0.0
    %988 = vmatpush1.msra.mxu0 0.0
    %989 = vmatprep.subr.mxu0 0.0
    %990 = vmatpush1.msra.mxu0 0.0
    %991 = vmatprep.subr.mxu0 0.0
    %992 = vmatpush1.msra.mxu0 0.0
    %993 = vmatprep.subr.mxu0 0.0
    %994 = vmatpush1.msra.mxu0 0.0
    %995 = vmatprep.subr.mxu0 0.0
    %996 = vmatpush1.msra.mxu0 0.0
    %997 = vmatprep.subr.mxu0 0.0
    %998 = vmatpush1.msra.mxu0 0.0
    %999 = vmatprep.subr.mxu0 0.0
    %1000 = vmatpush1.msra.mxu0 0.0
    %1001 = vmatprep.subr.mxu0 0.0
    %1002 = vmatpush1.msra.mxu0 0.0
    %1003 = vmatprep.subr.mxu0 0.0
    %1004 = vmatpush1.msra.mxu0 0.0
    %1005 = vmatprep.subr.mxu0 0.0
    %1006 = vmatpush1.msra.mxu0 0.0
    %1007 = vmatprep.subr.mxu0 0.0
    %1008 = vmatpush1.msra.mxu0 0.0
    %1009 = vmatprep.subr.mxu0 0.0
    %1010 = vmatpush1.msra.mxu0 0.0
    %1011 = vmatprep.subr.mxu0 0.0
    %1012 = vmatpush1.msra.mxu0 0.0
    %1013 = vmatprep.subr.mxu0 0.0
    %1014 = vmatpush1.msra.mxu0 0.0
    %1015 = vmatprep.subr.mxu0 0.0
    %1016 = vmatpush1.msra.mxu0 0.0
    %1017 = vmatprep.subr.mxu0 0.0
    %1018 = vmatpush1.msra.mxu0 0.0
    %1019 = vmatprep.subr.mxu0 0.0
    %1020 = vmatpush1.msra.mxu0 0.0
    %1021 = vmatprep.subr.mxu0 0.0
    %1022 = vmatpush1.msra.mxu0 0.0
    %1023 = vmatprep.subr.mxu0 0.0
    %1024 = vmatpush1.msra.mxu0 0.0
    %1025 = vmatprep.subr.mxu0 0.0
    %1026 = vmatpush1.msra.mxu0 0.0
    %1027 = vmatprep.subr.mxu0 0.0
    %1028 = vmatpush1.msra.mxu0 0.0
    %1029 = vmatprep.subr.mxu0 0.0
    %1030 = vmatpush1.msra.mxu0 0.0
    %1031 = vmatprep.subr.mxu0 0.0
    %1032 = vmatpush1.msra.mxu0 0.0
    %1033 = vmatprep.mubr.f32.mxu0 0.0
    %1034 = vmatmul.mubr.f32.gmra.mrb[0].mxu0 %v316
    %v1035 = vpop.f32.mrb[0].mxu0
    %v1036 = vadd.f32 0.0, %v1035
    %v1037 = vpop.f32.mrb[0].mxu0
    %1038 = vmatprep.mubr.f32.mxu0 0.0
    %1039 = vmatmul.mubr.f32.gmra.mrb[0].mxu0 %v319
    %v1040 = vpop.f32.mrb[0].mxu0
    %v1041 = vadd.f32 0.0, %v1040
    %v1042 = vpop.f32.mrb[0].mxu0
    %1043 = vmatprep.mubr.f32.mxu0 0.0
    %1044 = vmatmul.mubr.f32.gmra.mrb[0].mxu0 %v322
    %v1045 = vpop.f32.mrb[0].mxu0
    %v1046 = vadd.f32 0.0, %v1045
    %v1047 = vpop.f32.mrb[0].mxu0
    %1048 = vmatprep.mubr.f32.mxu0 0.0
    %1049 = vmatmul.mubr.f32.gmra.mrb[0].mxu0 %v325
    %v1050 = vpop.f32.mrb[0].mxu0
    %v1051 = vadd.f32 0.0, %v1050
    %v1052 = vpop.f32.mrb[0].mxu0
    %1053 = vdwg.mxu0
    %v1054 = vadd.f32 %v1036, %v1041
    %v1055 = vadd.f32 %v1054, %v1046
    %v1056 = vadd.f32 %v1055, %v1051
    %v1057 = vrot.slane %v1056, 4
    %v1058 = vadd.f32 %v1056, %v1057
    %v1059 = vrot.slane %v1058, 2
    %v1060 = vadd.f32 %v1058, %v1059
    %v1061 = vrot.slane %v1060, 1
    %v1062 = vadd.f32 %v1060, %v1061
    %v1063 = vmul.f32 %v1036, %v1036
    %v1064 = vmul.f32 %v1041, %v1041
    %v1065 = vmul.f32 %v1046, %v1046
    %v1066 = vmul.f32 %v1051, %v1051
    %v1067 = vadd.f32 %v1063, %v1064
    %v1068 = vadd.f32 %v1067, %v1065
    %v1069 = vadd.f32 %v1068, %v1066
    %v1070 = vrot.slane %v1069, 4
    %v1071 = vadd.f32 %v1069, %v1070
    %v1072 = vrot.slane %v1071, 2
    %v1073 = vadd.f32 %v1071, %v1072
    %v1074 = vrot.slane %v1073, 1
    %v1075 = vadd.f32 %v1073, %v1074
    %1076 = vmatprep.subr.mxu0 0.0
    %1077 = vmatpush1.msra.mxu0 %v85
    %1078 = vmatprep.subr.mxu0 0.0
    %1079 = vmatpush1.msra.mxu0 %v86
    %1080 = vmatprep.subr.mxu0 0.0
    %1081 = vmatpush1.msra.mxu0 %v87
    %1082 = vmatprep.subr.mxu0 0.0
    %1083 = vmatpush1.msra.mxu0 %v88
    %1084 = vmatprep.subr.mxu0 0.0
    %1085 = vmatpush1.msra.mxu0 %v89
    %1086 = vmatprep.subr.mxu0 0.0
    %1087 = vmatpush1.msra.mxu0 %v90
    %1088 = vmatprep.subr.mxu0 0.0
    %1089 = vmatpush1.msra.mxu0 %v91
    %1090 = vmatprep.subr.mxu0 0.0
    %1091 = vmatpush1.msra.mxu0 %v92
    %1092 = vmatprep.subr.mxu0 0.0
    %1093 = vmatpush1.msra.mxu0 %v93
    %1094 = vmatprep.subr.mxu0 0.0
    %1095 = vmatpush1.msra.mxu0 %v94
    %1096 = vmatprep.subr.mxu0 0.0
    %1097 = vmatpush1.msra.mxu0 %v95
    %1098 = vmatprep.subr.mxu0 0.0
    %1099 = vmatpush1.msra.mxu0 %v96
    %1100 = vmatprep.subr.mxu0 0.0
    %1101 = vmatpush1.msra.mxu0 %v97
    %1102 = vmatprep.subr.mxu0 0.0
    %1103 = vmatpush1.msra.mxu0 %v98
    %1104 = vmatprep.subr.mxu0 0.0
    %1105 = vmatpush1.msra.mxu0 %v99
    %1106 = vmatprep.subr.mxu0 0.0
    %1107 = vmatpush1.msra.mxu0 %v100
    %1108 = vmatprep.subr.mxu0 0.0
    %1109 = vmatpush1.msra.mxu0 0.0
    %1110 = vmatprep.subr.mxu0 0.0
    %1111 = vmatpush1.msra.mxu0 0.0
    %1112 = vmatprep.subr.mxu0 0.0
    %1113 = vmatpush1.msra.mxu0 0.0
    %1114 = vmatprep.subr.mxu0 0.0
    %1115 = vmatpush1.msra.mxu0 0.0
    %1116 = vmatprep.subr.mxu0 0.0
    %1117 = vmatpush1.msra.mxu0 0.0
    %1118 = vmatprep.subr.mxu0 0.0
    %1119 = vmatpush1.msra.mxu0 0.0
    %1120 = vmatprep.subr.mxu0 0.0
    %1121 = vmatpush1.msra.mxu0 0.0
    %1122 = vmatprep.subr.mxu0 0.0
    %1123 = vmatpush1.msra.mxu0 0.0
    %1124 = vmatprep.subr.mxu0 0.0
    %1125 = vmatpush1.msra.mxu0 0.0
    %1126 = vmatprep.subr.mxu0 0.0
    %1127 = vmatpush1.msra.mxu0 0.0
    %1128 = vmatprep.subr.mxu0 0.0
    %1129 = vmatpush1.msra.mxu0 0.0
    %1130 = vmatprep.subr.mxu0 0.0
    %1131 = vmatpush1.msra.mxu0 0.0
    %1132 = vmatprep.subr.mxu0 0.0
    %1133 = vmatpush1.msra.mxu0 0.0
    %1134 = vmatprep.subr.mxu0 0.0
    %1135 = vmatpush1.msra.mxu0 0.0
    %1136 = vmatprep.subr.mxu0 0.0
    %1137 = vmatpush1.msra.mxu0 0.0
    %1138 = vmatprep.subr.mxu0 0.0
    %1139 = vmatpush1.msra.mxu0 0.0
    %1140 = vmatprep.mubr.f32.mxu0 0.0
    %1141 = vmatmul.mubr.f32.gmra.mrb[0].mxu0 %v1062
    %v1142 = vpop.f32.mrb[0].mxu0
    %v1143 = vadd.f32 0.0, %v1142
    %v1144 = vpop.f32.mrb[0].mxu0
    %1145 = vdwg.mxu0
    %v1146 = vmul.f32 %v1143, 0.001953125
    %1147 = vmatprep.subr.mxu0 0.0
    %1148 = vmatpush1.msra.mxu0 %v85
    %1149 = vmatprep.subr.mxu0 0.0
    %1150 = vmatpush1.msra.mxu0 %v86
    %1151 = vmatprep.subr.mxu0 0.0
    %1152 = vmatpush1.msra.mxu0 %v87
    %1153 = vmatprep.subr.mxu0 0.0
    %1154 = vmatpush1.msra.mxu0 %v88
    %1155 = vmatprep.subr.mxu0 0.0
    %1156 = vmatpush1.msra.mxu0 %v89
    %1157 = vmatprep.subr.mxu0 0.0
    %1158 = vmatpush1.msra.mxu0 %v90
    %1159 = vmatprep.subr.mxu0 0.0
    %1160 = vmatpush1.msra.mxu0 %v91
    %1161 = vmatprep.subr.mxu0 0.0
    %1162 = vmatpush1.msra.mxu0 %v92
    %1163 = vmatprep.subr.mxu0 0.0
    %1164 = vmatpush1.msra.mxu0 %v93
    %1165 = vmatprep.subr.mxu0 0.0
    %1166 = vmatpush1.msra.mxu0 %v94
    %1167 = vmatprep.subr.mxu0 0.0
    %1168 = vmatpush1.msra.mxu0 %v95
    %1169 = vmatprep.subr.mxu0 0.0
    %1170 = vmatpush1.msra.mxu0 %v96
    %1171 = vmatprep.subr.mxu0 0.0
    %1172 = vmatpush1.msra.mxu0 %v97
    %1173 = vmatprep.subr.mxu0 0.0
    %1174 = vmatpush1.msra.mxu0 %v98
    %1175 = vmatprep.subr.mxu0 0.0
    %1176 = vmatpush1.msra.mxu0 %v99
    %1177 = vmatprep.subr.mxu0 0.0
    %1178 = vmatpush1.msra.mxu0 %v100
    %1179 = vmatprep.subr.mxu0 0.0
    %1180 = vmatpush1.msra.mxu0 0.0
    %1181 = vmatprep.subr.mxu0 0.0
    %1182 = vmatpush1.msra.mxu0 0.0
    %1183 = vmatprep.subr.mxu0 0.0
    %1184 = vmatpush1.msra.mxu0 0.0
    %1185 = vmatprep.subr.mxu0 0.0
    %1186 = vmatpush1.msra.mxu0 0.0
    %1187 = vmatprep.subr.mxu0 0.0
    %1188 = vmatpush1.msra.mxu0 0.0
    %1189 = vmatprep.subr.mxu0 0.0
    %1190 = vmatpush1.msra.mxu0 0.0
    %1191 = vmatprep.subr.mxu0 0.0
    %1192 = vmatpush1.msra.mxu0 0.0
    %1193 = vmatprep.subr.mxu0 0.0
    %1194 = vmatpush1.msra.mxu0 0.0
    %1195 = vmatprep.subr.mxu0 0.0
    %1196 = vmatpush1.msra.mxu0 0.0
    %1197 = vmatprep.subr.mxu0 0.0
    %1198 = vmatpush1.msra.mxu0 0.0
    %1199 = vmatprep.subr.mxu0 0.0
    %1200 = vmatpush1.msra.mxu0 0.0
    %1201 = vmatprep.subr.mxu0 0.0
    %1202 = vmatpush1.msra.mxu0 0.0
    %1203 = vmatprep.subr.mxu0 0.0
    %1204 = vmatpush1.msra.mxu0 0.0
    %1205 = vmatprep.subr.mxu0 0.0
    %1206 = vmatpush1.msra.mxu0 0.0
    %1207 = vmatprep.subr.mxu0 0.0
    %1208 = vmatpush1.msra.mxu0 0.0
    %1209 = vmatprep.subr.mxu0 0.0
    %1210 = vmatpush1.msra.mxu0 0.0
    %1211 = vmatprep.mubr.f32.mxu0 0.0
    %1212 = vmatmul.mubr.f32.gmra.mrb[0].mxu0 %v1075
    %v1213 = vpop.f32.mrb[0].mxu0
    %v1214 = vadd.f32 0.0, %v1213
    %v1215 = vpop.f32.mrb[0].mxu0
    %1216 = vdwg.mxu0
    %v1217 = vmul.f32 %v1214, 0.001953125
    %v1218 = vmul.f32 %v1146, %v1146
    %v1219 = vsub.f32 %v1217, %v1218
    %v1220 = vadd.f32 %v1219, 1e-05
    %v1221 = vrsqrt.pop %v1220
    %v1223 = vrot.slane %v1221, 4
    %v1225 = vmul.f32 %v101, %v1223
    %v1227 = vrot.slane %v1225, 4
    %v1229 = vmul.f32 %v1146, %v1227
    %v1231 = vrot.slane %v1229, 3
    %v1233 = vsub.f32 %v101, %v1231
    %v1234 = vsel %vm793, %v1227, 0
    %1236 = vmatprep.subr.mxu0 0.0
    %1237 = vmatpush1.msra.mxu0 %v84
    %1238 = vmatprep.subr.mxu0 0.0
    %1239 = vmatpush1.msra.mxu0 0.0
    %1240 = vmatprep.subr.mxu0 0.0
    %1241 = vmatpush1.msra.mxu0 0.0
    %1242 = vmatprep.subr.mxu0 0.0
    %1243 = vmatpush1.msra.mxu0 0.0
    %1244 = vmatprep.subr.mxu0 0.0
    %1245 = vmatpush1.msra.mxu0 0.0
    %1246 = vmatprep.subr.mxu0 0.0
    %1247 = vmatpush1.msra.mxu0 0.0
    %1248 = vmatprep.subr.mxu0 0.0
    %1249 = vmatpush1.msra.mxu0 0.0
    %1250 = vmatprep.subr.mxu0 0.0
    %1251 = vmatpush1.msra.mxu0 0.0
    %1252 = vmatprep.subr.mxu0 0.0
    %1253 = vmatpush1.msra.mxu0 0.0
    %1254 = vmatprep.subr.mxu0 0.0
    %1255 = vmatpush1.msra.mxu0 0.0
    %1256 = vmatprep.subr.mxu0 0.0
    %1257 = vmatpush1.msra.mxu0 0.0
    %1258 = vmatprep.subr.mxu0 0.0
    %1259 = vmatpush1.msra.mxu0 0.0
    %1260 = vmatprep.subr.mxu0 0.0
    %1261 = vmatpush1.msra.mxu0 0.0
    %1262 = vmatprep.subr.mxu0 0.0
    %1263 = vmatpush1.msra.mxu0 0.0
    %1264 = vmatprep.subr.mxu0 0.0
    %1265 = vmatpush1.msra.mxu0 0.0
    %1266 = vmatprep.subr.mxu0 0.0
    %1267 = vmatpush1.msra.mxu0 0.0
    %1268 = vmatprep.subr.mxu0 0.0
    %1269 = vmatpush1.msra.mxu0 0.0
    %1270 = vmatprep.subr.mxu0 0.0
    %1271 = vmatpush1.msra.mxu0 0.0
    %1272 = vmatprep.subr.mxu0 0.0
    %1273 = vmatpush1.msra.mxu0 0.0
    %1274 = vmatprep.subr.mxu0 0.0
    %1275 = vmatpush1.msra.mxu0 0.0
    %1276 = vmatprep.subr.mxu0 0.0
    %1277 = vmatpush1.msra.mxu0 0.0
    %1278 = vmatprep.subr.mxu0 0.0
    %1279 = vmatpush1.msra.mxu0 0.0
    %1280 = vmatprep.subr.mxu0 0.0
    %1281 = vmatpush1.msra.mxu0 0.0
    %1282 = vmatprep.subr.mxu0 0.0
    %1283 = vmatpush1.msra.mxu0 0.0
    %1284 = vmatprep.subr.mxu0 0.0
    %1285 = vmatpush1.msra.mxu0 0.0
    %1286 = vmatprep.subr.mxu0 0.0
    %1287 = vmatpush1.msra.mxu0 0.0
    %1288 = vmatprep.subr.mxu0 0.0
    %1289 = vmatpush1.msra.mxu0 0.0
    %1290 = vmatprep.subr.mxu0 0.0
    %1291 = vmatpush1.msra.mxu0 0.0
    %1292 = vmatprep.subr.mxu0 0.0
    %1293 = vmatpush1.msra.mxu0 0.0
    %1294 = vmatprep.subr.mxu0 0.0
    %1295 = vmatpush1.msra.mxu0 0.0
    %1296 = vmatprep.subr.mxu0 0.0
    %1297 = vmatpush1.msra.mxu0 0.0
    %1298 = vmatprep.subr.mxu0 0.0
    %1299 = vmatpush1.msra.mxu0 0.0
    %1300 = vmatprep.mubr.f32.mxu0 0.0
    %1301 = vmatmul.mubr.f32.gmra.mrb[0].mxu0 %v1234
    %v1302 = vpop.f32.mrb[0].mxu0
    %v1303 = vadd.f32 0.0, %v1302
    %v1304 = vpop.f32.mrb[0].mxu0
    %1305 = vdwg.mxu0
    %v1307 = vrot.slane %v1233, 5
    %v1308 = vsel %vm793, %v1307, 0
    %1310 = vmatprep.subr.mxu0 0.0
    %1311 = vmatpush1.msra.mxu0 %v84
    %1312 = vmatprep.subr.mxu0 0.0
    %1313 = vmatpush1.msra.mxu0 0.0
    %1314 = vmatprep.subr.mxu0 0.0
    %1315 = vmatpush1.msra.mxu0 0.0
    %1316 = vmatprep.subr.mxu0 0.0
    %1317 = vmatpush1.msra.mxu0 0.0
    %1318 = vmatprep.subr.mxu0 0.0
    %1319 = vmatpush1.msra.mxu0 0.0
    %1320 = vmatprep.subr.mxu0 0.0
    %1321 = vmatpush1.msra.mxu0 0.0
    %1322 = vmatprep.subr.mxu0 0.0
    %1323 = vmatpush1.msra.mxu0 0.0
    %1324 = vmatprep.subr.mxu0 0.0
    %1325 = vmatpush1.msra.mxu0 0.0
    %1326 = vmatprep.subr.mxu0 0.0
    %1327 = vmatpush1.msra.mxu0 0.0
    %1328 = vmatprep.subr.mxu0 0.0
    %1329 = vmatpush1.msra.mxu0 0.0
    %1330 = vmatprep.subr.mxu0 0.0
    %1331 = vmatpush1.msra.mxu0 0.0
    %1332 = vmatprep.subr.mxu0 0.0
    %1333 = vmatpush1.msra.mxu0 0.0
    %1334 = vmatprep.subr.mxu0 0.0
    %1335 = vmatpush1.msra.mxu0 0.0
    %1336 = vmatprep.subr.mxu0 0.0
    %1337 = vmatpush1.msra.mxu0 0.0
    %1338 = vmatprep.subr.mxu0 0.0
    %1339 = vmatpush1.msra.mxu0 0.0
    %1340 = vmatprep.subr.mxu0 0.0
    %1341 = vmatpush1.msra.mxu0 0.0
    %1342 = vmatprep.subr.mxu0 0.0
    %1343 = vmatpush1.msra.mxu0 0.0
    %1344 = vmatprep.subr.mxu0 0.0
    %1345 = vmatpush1.msra.mxu0 0.0
    %1346 = vmatprep.subr.mxu0 0.0
    %1347 = vmatpush1.msra.mxu0 0.0
    %1348 = vmatprep.subr.mxu0 0.0
    %1349 = vmatpush1.msra.mxu0 0.0
    %1350 = vmatprep.subr.mxu0 0.0
    %1351 = vmatpush1.msra.mxu0 0.0
    %1352 = vmatprep.subr.mxu0 0.0
    %1353 = vmatpush1.msra.mxu0 0.0
    %1354 = vmatprep.subr.mxu0 0.0
    %1355 = vmatpush1.msra.mxu0 0.0
    %1356 = vmatprep.subr.mxu0 0.0
    %1357 = vmatpush1.msra.mxu0 0.0
    %1358 = vmatprep.subr.mxu0 0.0
    %1359 = vmatpush1.msra.mxu0 0.0
    %1360 = vmatprep.subr.mxu0 0.0
    %1361 = vmatpush1.msra.mxu0 0.0
    %1362 = vmatprep.subr.mxu0 0.0
    %1363 = vmatpush1.msra.mxu0 0.0
    %1364 = vmatprep.subr.mxu0 0.0
    %1365 = vmatpush1.msra.mxu0 0.0
    %1366 = vmatprep.subr.mxu0 0.0
    %1367 = vmatpush1.msra.mxu0 0.0
    %1368 = vmatprep.subr.mxu0 0.0
    %1369 = vmatpush1.msra.mxu0 0.0
    %1370 = vmatprep.subr.mxu0 0.0
    %1371 = vmatpush1.msra.mxu0 0.0
    %1372 = vmatprep.subr.mxu0 0.0
    %1373 = vmatpush1.msra.mxu0 0.0
    %1374 = vmatprep.mubr.f32.mxu0 0.0
    %1375 = vmatmul.mubr.f32.gmra.mrb[0].mxu0 %v1308
    %v1376 = vpop.f32.mrb[0].mxu0
    %v1377 = vadd.f32 0.0, %v1376
    %v1378 = vpop.f32.mrb[0].mxu0
    %1379 = vdwg.mxu0
    %v1380 = vlaneseq
    %v1381 = vshrl.u32 %v1380, 7
    %v1382 = vsub.s32 0, %v1381
    %v1383 = vrot.slane %v1303, %v1382
    %v1384 = vmul.f32 %v1036, %v1383
    %v1385 = vmul.f32 %v1041, %v1383
    %v1386 = vmul.f32 %v1046, %v1383
    %v1387 = vmul.f32 %v1051, %v1383
    %v1388 = vlaneseq
    %v1389 = vshrl.u32 %v1388, 7
    %v1390 = vsub.s32 0, %v1389
    %v1391 = vrot.slane %v1377, %v1390
    %v1392 = vadd.f32 %v1384, %v1391
    %v1393 = vadd.f32 %v1385, %v1391
    %v1394 = vadd.f32 %v1386, %v1391
    %v1395 = vadd.f32 %v1387, %v1391
    %1396 = vmatprep.subr.mxu0 0.0
    %1397 = vmatpush1.msra.mxu0 %v957
    %1398 = vmatprep.subr.mxu0 0.0
    %1399 = vmatpush1.msra.mxu0 %v958
    %1400 = vmatprep.subr.mxu0 0.0
    %1401 = vmatpush1.msra.mxu0 %v959
    %1402 = vmatprep.subr.mxu0 0.0
    %1403 = vmatpush1.msra.mxu0 %v960
    %1404 = vmatprep.subr.mxu0 0.0
    %1405 = vmatpush1.msra.mxu0 0.0
    %1406 = vmatprep.subr.mxu0 0.0
    %1407 = vmatpush1.msra.mxu0 0.0
    %1408 = vmatprep.subr.mxu0 0.0
    %1409 = vmatpush1.msra.mxu0 0.0
    %1410 = vmatprep.subr.mxu0 0.0
    %1411 = vmatpush1.msra.mxu0 0.0
    %1412 = vmatprep.subr.mxu0 0.0
    %1413 = vmatpush1.msra.mxu0 0.0
    %1414 = vmatprep.subr.mxu0 0.0
    %1415 = vmatpush1.msra.mxu0 0.0
    %1416 = vmatprep.subr.mxu0 0.0
    %1417 = vmatpush1.msra.mxu0 0.0
    %1418 = vmatprep.subr.mxu0 0.0
    %1419 = vmatpush1.msra.mxu0 0.0
    %1420 = vmatprep.subr.mxu0 0.0
    %1421 = vmatpush1.msra.mxu0 0.0
    %1422 = vmatprep.subr.mxu0 0.0
    %1423 = vmatpush1.msra.mxu0 0.0
    %1424 = vmatprep.subr.mxu0 0.0
    %1425 = vmatpush1.msra.mxu0 0.0
    %1426 = vmatprep.subr.mxu0 0.0
    %1427 = vmatpush1.msra.mxu0 0.0
    %1428 = vmatprep.subr.mxu0 0.0
    %1429 = vmatpush1.msra.mxu0 0.0
    %1430 = vmatprep.subr.mxu0 0.0
    %1431 = vmatpush1.msra.mxu0 0.0
    %1432 = vmatprep.subr.mxu0 0.0
    %1433 = vmatpush1.msra.mxu0 0.0
    %1434 = vmatprep.subr.mxu0 0.0
    %1435 = vmatpush1.msra.mxu0 0.0
    %1436 = vmatprep.subr.mxu0 0.0
    %1437 = vmatpush1.msra.mxu0 0.0
    %1438 = vmatprep.subr.mxu0 0.0
    %1439 = vmatpush1.msra.mxu0 0.0
    %1440 = vmatprep.subr.mxu0 0.0
    %1441 = vmatpush1.msra.mxu0 0.0
    %1442 = vmatprep.subr.mxu0 0.0
    %1443 = vmatpush1.msra.mxu0 0.0
    %1444 = vmatprep.subr.mxu0 0.0
    %1445 = vmatpush1.msra.mxu0 0.0
    %1446 = vmatprep.subr.mxu0 0.0
    %1447 = vmatpush1.msra.mxu0 0.0
    %1448 = vmatprep.subr.mxu0 0.0
    %1449 = vmatpush1.msra.mxu0 0.0
    %1450 = vmatprep.subr.mxu0 0.0
    %1451 = vmatpush1.msra.mxu0 0.0
    %1452 = vmatprep.subr.mxu0 0.0
    %1453 = vmatpush1.msra.mxu0 0.0
    %1454 = vmatprep.subr.mxu0 0.0
    %1455 = vmatpush1.msra.mxu0 0.0
    %1456 = vmatprep.subr.mxu0 0.0
    %1457 = vmatpush1.msra.mxu0 0.0
    %1458 = vmatprep.subr.mxu0 0.0
    %1459 = vmatpush1.msra.mxu0 0.0
    %1460 = vmatprep.mubr.f32.mxu0 0.0
    %1461 = vmatmul.mubr.f32.gmra.mrb[0].mxu0 %v104
    %v1462 = vpop.f32.mrb[0].mxu0
    %v1463 = vadd.f32 0.0, %v1462
    %v1464 = vpop.f32.mrb[0].mxu0
    %1465 = vmatprep.mubr.f32.mxu0 0.0
    %1466 = vmatmul.mubr.f32.gmra.mrb[0].mxu0 %v107
    %v1467 = vpop.f32.mrb[0].mxu0
    %v1468 = vadd.f32 0.0, %v1467
    %v1469 = vpop.f32.mrb[0].mxu0
    %1470 = vmatprep.mubr.f32.mxu0 0.0
    %1471 = vmatmul.mubr.f32.gmra.mrb[0].mxu0 %v110
    %v1472 = vpop.f32.mrb[0].mxu0
    %v1473 = vadd.f32 0.0, %v1472
    %v1474 = vpop.f32.mrb[0].mxu0
    %1475 = vmatprep.mubr.f32.mxu0 0.0
    %1476 = vmatmul.mubr.f32.gmra.mrb[0].mxu0 %v113
    %v1477 = vpop.f32.mrb[0].mxu0
    %v1478 = vadd.f32 0.0, %v1477
    %v1479 = vpop.f32.mrb[0].mxu0
    %1480 = vdwg.mxu0
    %1481 = vmatprep.subr.mxu0 0.0
    %1482 = vmatpush1.msra.mxu0 %v957
    %1483 = vmatprep.subr.mxu0 0.0
    %1484 = vmatpush1.msra.mxu0 %v958
    %1485 = vmatprep.subr.mxu0 0.0
    %1486 = vmatpush1.msra.mxu0 %v959
    %1487 = vmatprep.subr.mxu0 0.0
    %1488 = vmatpush1.msra.mxu0 %v960
    %1489 = vmatprep.subr.mxu0 0.0
    %1490 = vmatpush1.msra.mxu0 0.0
    %1491 = vmatprep.subr.mxu0 0.0
    %1492 = vmatpush1.msra.mxu0 0.0
    %1493 = vmatprep.subr.mxu0 0.0
    %1494 = vmatpush1.msra.mxu0 0.0
    %1495 = vmatprep.subr.mxu0 0.0
    %1496 = vmatpush1.msra.mxu0 0.0
    %1497 = vmatprep.subr.mxu0 0.0
    %1498 = vmatpush1.msra.mxu0 0.0
    %1499 = vmatprep.subr.mxu0 0.0
    %1500 = vmatpush1.msra.mxu0 0.0
    %1501 = vmatprep.subr.mxu0 0.0
    %1502 = vmatpush1.msra.mxu0 0.0
    %1503 = vmatprep.subr.mxu0 0.0
    %1504 = vmatpush1.msra.mxu0 0.0
    %1505 = vmatprep.subr.mxu0 0.0
    %1506 = vmatpush1.msra.mxu0 0.0
    %1507 = vmatprep.subr.mxu0 0.0
    %1508 = vmatpush1.msra.mxu0 0.0
    %1509 = vmatprep.subr.mxu0 0.0
    %1510 = vmatpush1.msra.mxu0 0.0
    %1511 = vmatprep.subr.mxu0 0.0
    %1512 = vmatpush1.msra.mxu0 0.0
    %1513 = vmatprep.subr.mxu0 0.0
    %1514 = vmatpush1.msra.mxu0 0.0
    %1515 = vmatprep.subr.mxu0 0.0
    %1516 = vmatpush1.msra.mxu0 0.0
    %1517 = vmatprep.subr.mxu0 0.0
    %1518 = vmatpush1.msra.mxu0 0.0
    %1519 = vmatprep.subr.mxu0 0.0
    %1520 = vmatpush1.msra.mxu0 0.0
    %1521 = vmatprep.subr.mxu0 0.0
    %1522 = vmatpush1.msra.mxu0 0.0
    %1523 = vmatprep.subr.mxu0 0.0
    %1524 = vmatpush1.msra.mxu0 0.0
    %1525 = vmatprep.subr.mxu0 0.0
    %1526 = vmatpush1.msra.mxu0 0.0
    %1527 = vmatprep.subr.mxu0 0.0
    %1528 = vmatpush1.msra.mxu0 0.0
    %1529 = vmatprep.subr.mxu0 0.0
    %1530 = vmatpush1.msra.mxu0 0.0
    %1531 = vmatprep.subr.mxu0 0.0
    %1532 = vmatpush1.msra.mxu0 0.0
    %1533 = vmatprep.subr.mxu0 0.0
    %1534 = vmatpush1.msra.mxu0 0.0
    %1535 = vmatprep.subr.mxu0 0.0
    %1536 = vmatpush1.msra.mxu0 0.0
    %1537 = vmatprep.subr.mxu0 0.0
    %1538 = vmatpush1.msra.mxu0 0.0
    %1539 = vmatprep.subr.mxu0 0.0
    %1540 = vmatpush1.msra.mxu0 0.0
    %1541 = vmatprep.subr.mxu0 0.0
    %1542 = vmatpush1.msra.mxu0 0.0
    %1543 = vmatprep.subr.mxu0 0.0
    %1544 = vmatpush1.msra.mxu0 0.0
    %1545 = vmatprep.mubr.f32.mxu0 0.0
    %1546 = vmatmul.mubr.f32.gmra.mrb[0].mxu0 %v201
    %v1547 = vpop.f32.mrb[0].mxu0
    %v1548 = vadd.f32 0.0, %v1547
    %v1549 = vpop.f32.mrb[0].mxu0
    %1550 = vmatprep.mubr.f32.mxu0 0.0
    %1551 = vmatmul.mubr.f32.gmra.mrb[0].mxu0 %v204
    %v1552 = vpop.f32.mrb[0].mxu0
    %v1553 = vadd.f32 0.0, %v1552
    %v1554 = vpop.f32.mrb[0].mxu0
    %1555 = vmatprep.mubr.f32.mxu0 0.0
    %1556 = vmatmul.mubr.f32.gmra.mrb[0].mxu0 %v207
    %v1557 = vpop.f32.mrb[0].mxu0
    %v1558 = vadd.f32 0.0, %v1557
    %v1559 = vpop.f32.mrb[0].mxu0
    %1560 = vmatprep.mubr.f32.mxu0 0.0
    %1561 = vmatmul.mubr.f32.gmra.mrb[0].mxu0 %v210
    %v1562 = vpop.f32.mrb[0].mxu0
    %v1563 = vadd.f32 0.0, %v1562
    %v1564 = vpop.f32.mrb[0].mxu0
    %1565 = vdwg.mxu0
    %v1566 = vld [vmem:[#allocation7] sm:$0xff]
    %v1567 = vld [vmem:[#allocation7 + $0x8] sm:$0xff]
    %v1568 = vld [vmem:[#allocation7 + $0x10] sm:$0xff]
    %v1569 = vld [vmem:[#allocation7 + $0x18] sm:$0xff]
    %v1570 = vld [vmem:[#allocation7 + $0x20] sm:$0xff]
    %v1571 = vld [vmem:[#allocation7 + $0x28] sm:$0xff]
    %v1572 = vld [vmem:[#allocation7 + $0x30] sm:$0xff]
    %v1573 = vld [vmem:[#allocation7 + $0x38] sm:$0xff]
    %v1574 = vld [vmem:[#allocation7 + $0x40] sm:$0xff]
    %v1575 = vld [vmem:[#allocation7 + $0x48] sm:$0xff]
    %v1576 = vld [vmem:[#allocation7 + $0x50] sm:$0xff]
    %v1577 = vld [vmem:[#allocation7 + $0x58] sm:$0xff]
    %v1578 = vld [vmem:[#allocation7 + $0x60] sm:$0xff]
    %v1579 = vld [vmem:[#allocation7 + $0x68] sm:$0xff]
    %v1580 = vld [vmem:[#allocation7 + $0x70] sm:$0xff]
    %v1581 = vld [vmem:[#allocation7 + $0x78] sm:$0xff]
    %s1582 = scalar_lea.vmem [#allocation7], 128
    %v1583 = vld [vmem:[%s1582] sm:$0xff]
    %v1584 = vld [vmem:[%s1582 + $0x8] sm:$0xff]
    %v1585 = vld [vmem:[%s1582 + $0x10] sm:$0xff]
    %v1586 = vld [vmem:[%s1582 + $0x18] sm:$0xff]
    %v1587 = vld [vmem:[%s1582 + $0x20] sm:$0xff]
    %v1588 = vld [vmem:[%s1582 + $0x28] sm:$0xff]
    %v1589 = vld [vmem:[%s1582 + $0x30] sm:$0xff]
    %v1590 = vld [vmem:[%s1582 + $0x38] sm:$0xff]
    %v1591 = vld [vmem:[%s1582 + $0x40] sm:$0xff]
    %v1592 = vld [vmem:[%s1582 + $0x48] sm:$0xff]
    %v1593 = vld [vmem:[%s1582 + $0x50] sm:$0xff]
    %v1594 = vld [vmem:[%s1582 + $0x58] sm:$0xff]
    %v1595 = vld [vmem:[%s1582 + $0x60] sm:$0xff]
    %v1596 = vld [vmem:[%s1582 + $0x68] sm:$0xff]
    %v1597 = vld [vmem:[%s1582 + $0x70] sm:$0xff]
    %v1598 = vld [vmem:[%s1582 + $0x78] sm:$0xff]
    %1599 = vmatprep.subr.mxu0 0.0
    %1600 = vmatpush1.msra.mxu0 %v1583
    %1601 = vmatprep.subr.mxu0 0.0
    %1602 = vmatpush1.msra.mxu0 %v1584
    %1603 = vmatprep.subr.mxu0 0.0
    %1604 = vmatpush1.msra.mxu0 %v1585
    %1605 = vmatprep.subr.mxu0 0.0
    %1606 = vmatpush1.msra.mxu0 %v1586
    %1607 = vmatprep.subr.mxu0 0.0
    %1608 = vmatpush1.msra.mxu0 %v1587
    %1609 = vmatprep.subr.mxu0 0.0
    %1610 = vmatpush1.msra.mxu0 %v1588
    %1611 = vmatprep.subr.mxu0 0.0
    %1612 = vmatpush1.msra.mxu0 %v1589
    %1613 = vmatprep.subr.mxu0 0.0
    %1614 = vmatpush1.msra.mxu0 %v1590
    %1615 = vmatprep.subr.mxu0 0.0
    %1616 = vmatpush1.msra.mxu0 %v1591
    %1617 = vmatprep.subr.mxu0 0.0
    %1618 = vmatpush1.msra.mxu0 %v1592
    %1619 = vmatprep.subr.mxu0 0.0
    %1620 = vmatpush1.msra.mxu0 %v1593
    %1621 = vmatprep.subr.mxu0 0.0
    %1622 = vmatpush1.msra.mxu0 %v1594
    %1623 = vmatprep.subr.mxu0 0.0
    %1624 = vmatpush1.msra.mxu0 %v1595
    %1625 = vmatprep.subr.mxu0 0.0
    %1626 = vmatpush1.msra.mxu0 %v1596
    %1627 = vmatprep.subr.mxu0 0.0
    %1628 = vmatpush1.msra.mxu0 %v1597
    %1629 = vmatprep.subr.mxu0 0.0
    %1630 = vmatpush1.msra.mxu0 %v1598
    %1631 = vmatprep.subr.mxu0 0.0
    %1632 = vmatpush1.msra.mxu0 0.0
    %1633 = vmatprep.subr.mxu0 0.0
    %1634 = vmatpush1.msra.mxu0 0.0
    %1635 = vmatprep.subr.mxu0 0.0
    %1636 = vmatpush1.msra.mxu0 0.0
    %1637 = vmatprep.subr.mxu0 0.0
    %1638 = vmatpush1.msra.mxu0 0.0
    %1639 = vmatprep.subr.mxu0 0.0
    %1640 = vmatpush1.msra.mxu0 0.0
    %1641 = vmatprep.subr.mxu0 0.0
    %1642 = vmatpush1.msra.mxu0 0.0
    %1643 = vmatprep.subr.mxu0 0.0
    %1644 = vmatpush1.msra.mxu0 0.0
    %1645 = vmatprep.subr.mxu0 0.0
    %1646 = vmatpush1.msra.mxu0 0.0
    %1647 = vmatprep.subr.mxu0 0.0
    %1648 = vmatpush1.msra.mxu0 0.0
    %1649 = vmatprep.subr.mxu0 0.0
    %1650 = vmatpush1.msra.mxu0 0.0
    %1651 = vmatprep.subr.mxu0 0.0
    %1652 = vmatpush1.msra.mxu0 0.0
    %1653 = vmatprep.subr.mxu0 0.0
    %1654 = vmatpush1.msra.mxu0 0.0
    %1655 = vmatprep.subr.mxu0 0.0
    %1656 = vmatpush1.msra.mxu0 0.0
    %1657 = vmatprep.subr.mxu0 0.0
    %1658 = vmatpush1.msra.mxu0 0.0
    %1659 = vmatprep.subr.mxu0 0.0
    %1660 = vmatpush1.msra.mxu0 0.0
    %1661 = vmatprep.subr.mxu0 0.0
    %1662 = vmatpush1.msra.mxu0 0.0
    %1663 = vmatprep.mubr.f32.mxu0 0.0
    %1664 = vmatmul.mubr.f32.gmra.mrb[0].mxu0 %v957
    %v1665 = vpop.f32.mrb[0].mxu0
    %v1666 = vadd.f32 0.0, %v1665
    %v1667 = vpop.f32.mrb[0].mxu0
    %1668 = vmatprep.mubr.f32.mxu0 0.0
    %1669 = vmatmul.mubr.f32.gmra.mrb[0].mxu0 %v958
    %v1670 = vpop.f32.mrb[0].mxu0
    %v1671 = vadd.f32 0.0, %v1670
    %v1672 = vpop.f32.mrb[0].mxu0
    %1673 = vmatprep.mubr.f32.mxu0 0.0
    %1674 = vmatmul.mubr.f32.gmra.mrb[0].mxu0 %v959
    %v1675 = vpop.f32.mrb[0].mxu0
    %v1676 = vadd.f32 0.0, %v1675
    %v1677 = vpop.f32.mrb[0].mxu0
    %1678 = vmatprep.mubr.f32.mxu0 0.0
    %1679 = vmatmul.mubr.f32.gmra.mrb[0].mxu0 %v960
    %v1680 = vpop.f32.mrb[0].mxu0
    %v1681 = vadd.f32 0.0, %v1680
    %v1682 = vpop.f32.mrb[0].mxu0
    %1683 = vdwg.mxu0
    %1684 = vmatprep.subr.mxu0 0.0
    %1685 = vmatpush1.msra.mxu0 %v1566
    %1686 = vmatprep.subr.mxu0 0.0
    %1687 = vmatpush1.msra.mxu0 %v1567
    %1688 = vmatprep.subr.mxu0 0.0
    %1689 = vmatpush1.msra.mxu0 %v1568
    %1690 = vmatprep.subr.mxu0 0.0
    %1691 = vmatpush1.msra.mxu0 %v1569
    %1692 = vmatprep.subr.mxu0 0.0
    %1693 = vmatpush1.msra.mxu0 %v1570
    %1694 = vmatprep.subr.mxu0 0.0
    %1695 = vmatpush1.msra.mxu0 %v1571
    %1696 = vmatprep.subr.mxu0 0.0
    %1697 = vmatpush1.msra.mxu0 %v1572
    %1698 = vmatprep.subr.mxu0 0.0
    %1699 = vmatpush1.msra.mxu0 %v1573
    %1700 = vmatprep.subr.mxu0 0.0
    %1701 = vmatpush1.msra.mxu0 %v1574
    %1702 = vmatprep.subr.mxu0 0.0
    %1703 = vmatpush1.msra.mxu0 %v1575
    %1704 = vmatprep.subr.mxu0 0.0
    %1705 = vmatpush1.msra.mxu0 %v1576
    %1706 = vmatprep.subr.mxu0 0.0
    %1707 = vmatpush1.msra.mxu0 %v1577
    %1708 = vmatprep.subr.mxu0 0.0
    %1709 = vmatpush1.msra.mxu0 %v1578
    %1710 = vmatprep.subr.mxu0 0.0
    %1711 = vmatpush1.msra.mxu0 %v1579
    %1712 = vmatprep.subr.mxu0 0.0
    %1713 = vmatpush1.msra.mxu0 %v1580
    %1714 = vmatprep.subr.mxu0 0.0
    %1715 = vmatpush1.msra.mxu0 %v1581
    %1716 = vmatprep.subr.mxu0 0.0
    %1717 = vmatpush1.msra.mxu0 0.0
    %1718 = vmatprep.subr.mxu0 0.0
    %1719 = vmatpush1.msra.mxu0 0.0
    %1720 = vmatprep.subr.mxu0 0.0
    %1721 = vmatpush1.msra.mxu0 0.0
    %1722 = vmatprep.subr.mxu0 0.0
    %1723 = vmatpush1.msra.mxu0 0.0
    %1724 = vmatprep.subr.mxu0 0.0
    %1725 = vmatpush1.msra.mxu0 0.0
    %1726 = vmatprep.subr.mxu0 0.0
    %1727 = vmatpush1.msra.mxu0 0.0
    %1728 = vmatprep.subr.mxu0 0.0
    %1729 = vmatpush1.msra.mxu0 0.0
    %1730 = vmatprep.subr.mxu0 0.0
    %1731 = vmatpush1.msra.mxu0 0.0
    %1732 = vmatprep.subr.mxu0 0.0
    %1733 = vmatpush1.msra.mxu0 0.0
    %1734 = vmatprep.subr.mxu0 0.0
    %1735 = vmatpush1.msra.mxu0 0.0
    %1736 = vmatprep.subr.mxu0 0.0
    %1737 = vmatpush1.msra.mxu0 0.0
    %1738 = vmatprep.subr.mxu0 0.0
    %1739 = vmatpush1.msra.mxu0 0.0
    %1740 = vmatprep.subr.mxu0 0.0
    %1741 = vmatpush1.msra.mxu0 0.0
    %1742 = vmatprep.subr.mxu0 0.0
    %1743 = vmatpush1.msra.mxu0 0.0
    %1744 = vmatprep.subr.mxu0 0.0
    %1745 = vmatpush1.msra.mxu0 0.0
    %1746 = vmatprep.subr.mxu0 0.0
    %1747 = vmatpush1.msra.mxu0 0.0
    %1748 = vmatprep.mubr.f32.mxu0 0.0
    %1749 = vmatmul.mubr.f32.gmra.mrb[0].mxu0 %v1463
    %v1750 = vpop.f32.mrb[0].mxu0
    %v1751 = vadd.f32 %v1666, %v1750
    %v1752 = vpop.f32.mrb[0].mxu0
    %1753 = vmatprep.mubr.f32.mxu0 0.0
    %1754 = vmatmul.mubr.f32.gmra.mrb[0].mxu0 %v1468
    %v1755 = vpop.f32.mrb[0].mxu0
    %v1756 = vadd.f32 %v1671, %v1755
    %v1757 = vpop.f32.mrb[0].mxu0
    %1758 = vmatprep.mubr.f32.mxu0 0.0
    %1759 = vmatmul.mubr.f32.gmra.mrb[0].mxu0 %v1473
    %v1760 = vpop.f32.mrb[0].mxu0
    %v1761 = vadd.f32 %v1676, %v1760
    %v1762 = vpop.f32.mrb[0].mxu0
    %1763 = vmatprep.mubr.f32.mxu0 0.0
    %1764 = vmatmul.mubr.f32.gmra.mrb[0].mxu0 %v1478
    %v1765 = vpop.f32.mrb[0].mxu0
    %v1766 = vadd.f32 %v1681, %v1765
    %v1767 = vpop.f32.mrb[0].mxu0
    %1768 = vdwg.mxu0
    %s1769 = scalar_lea.vmem [#allocation7], 256
    %v1770 = vld [vmem:[%s1769] sm:$0xff]
    %v1771 = vld [vmem:[%s1769 + $0x8] sm:$0xff]
    %v1772 = vld [vmem:[%s1769 + $0x10] sm:$0xff]
    %v1773 = vld [vmem:[%s1769 + $0x18] sm:$0xff]
    %v1774 = vld [vmem:[%s1769 + $0x20] sm:$0xff]
    %v1775 = vld [vmem:[%s1769 + $0x28] sm:$0xff]
    %v1776 = vld [vmem:[%s1769 + $0x30] sm:$0xff]
    %v1777 = vld [vmem:[%s1769 + $0x38] sm:$0xff]
    %v1778 = vld [vmem:[%s1769 + $0x40] sm:$0xff]
    %v1779 = vld [vmem:[%s1769 + $0x48] sm:$0xff]
    %v1780 = vld [vmem:[%s1769 + $0x50] sm:$0xff]
    %v1781 = vld [vmem:[%s1769 + $0x58] sm:$0xff]
    %v1782 = vld [vmem:[%s1769 + $0x60] sm:$0xff]
    %v1783 = vld [vmem:[%s1769 + $0x68] sm:$0xff]
    %v1784 = vld [vmem:[%s1769 + $0x70] sm:$0xff]
    %v1785 = vld [vmem:[%s1769 + $0x78] sm:$0xff]
    %1786 = vmatprep.subr.mxu0 0.0
    %1787 = vmatpush1.msra.mxu0 %v1770
    %1788 = vmatprep.subr.mxu0 0.0
    %1789 = vmatpush1.msra.mxu0 %v1771
    %1790 = vmatprep.subr.mxu0 0.0
    %1791 = vmatpush1.msra.mxu0 %v1772
    %1792 = vmatprep.subr.mxu0 0.0
    %1793 = vmatpush1.msra.mxu0 %v1773
    %1794 = vmatprep.subr.mxu0 0.0
    %1795 = vmatpush1.msra.mxu0 %v1774
    %1796 = vmatprep.subr.mxu0 0.0
    %1797 = vmatpush1.msra.mxu0 %v1775
    %1798 = vmatprep.subr.mxu0 0.0
    %1799 = vmatpush1.msra.mxu0 %v1776
    %1800 = vmatprep.subr.mxu0 0.0
    %1801 = vmatpush1.msra.mxu0 %v1777
    %1802 = vmatprep.subr.mxu0 0.0
    %1803 = vmatpush1.msra.mxu0 %v1778
    %1804 = vmatprep.subr.mxu0 0.0
    %1805 = vmatpush1.msra.mxu0 %v1779
    %1806 = vmatprep.subr.mxu0 0.0
    %1807 = vmatpush1.msra.mxu0 %v1780
    %1808 = vmatprep.subr.mxu0 0.0
    %1809 = vmatpush1.msra.mxu0 %v1781
    %1810 = vmatprep.subr.mxu0 0.0
    %1811 = vmatpush1.msra.mxu0 %v1782
    %1812 = vmatprep.subr.mxu0 0.0
    %1813 = vmatpush1.msra.mxu0 %v1783
    %1814 = vmatprep.subr.mxu0 0.0
    %1815 = vmatpush1.msra.mxu0 %v1784
    %1816 = vmatprep.subr.mxu0 0.0
    %1817 = vmatpush1.msra.mxu0 %v1785
    %1818 = vmatprep.subr.mxu0 0.0
    %1819 = vmatpush1.msra.mxu0 0.0
    %1820 = vmatprep.subr.mxu0 0.0
    %1821 = vmatpush1.msra.mxu0 0.0
    %1822 = vmatprep.subr.mxu0 0.0
    %1823 = vmatpush1.msra.mxu0 0.0
    %1824 = vmatprep.subr.mxu0 0.0
    %1825 = vmatpush1.msra.mxu0 0.0
    %1826 = vmatprep.subr.mxu0 0.0
    %1827 = vmatpush1.msra.mxu0 0.0
    %1828 = vmatprep.subr.mxu0 0.0
    %1829 = vmatpush1.msra.mxu0 0.0
    %1830 = vmatprep.subr.mxu0 0.0
    %1831 = vmatpush1.msra.mxu0 0.0
    %1832 = vmatprep.subr.mxu0 0.0
    %1833 = vmatpush1.msra.mxu0 0.0
    %1834 = vmatprep.subr.mxu0 0.0
    %1835 = vmatpush1.msra.mxu0 0.0
    %1836 = vmatprep.subr.mxu0 0.0
    %1837 = vmatpush1.msra.mxu0 0.0
    %1838 = vmatprep.subr.mxu0 0.0
    %1839 = vmatpush1.msra.mxu0 0.0
    %1840 = vmatprep.subr.mxu0 0.0
    %1841 = vmatpush1.msra.mxu0 0.0
    %1842 = vmatprep.subr.mxu0 0.0
    %1843 = vmatpush1.msra.mxu0 0.0
    %1844 = vmatprep.subr.mxu0 0.0
    %1845 = vmatpush1.msra.mxu0 0.0
    %1846 = vmatprep.subr.mxu0 0.0
    %1847 = vmatpush1.msra.mxu0 0.0
    %1848 = vmatprep.subr.mxu0 0.0
    %1849 = vmatpush1.msra.mxu0 0.0
    %1850 = vmatprep.mubr.f32.mxu0 0.0
    %1851 = vmatmul.mubr.f32.gmra.mrb[0].mxu0 %v1548
    %v1852 = vpop.f32.mrb[0].mxu0
    %v1853 = vadd.f32 0.0, %v1852
    %v1854 = vpop.f32.mrb[0].mxu0
    %1855 = vmatprep.mubr.f32.mxu0 0.0
    %1856 = vmatmul.mubr.f32.gmra.mrb[0].mxu0 %v1553
    %v1857 = vpop.f32.mrb[0].mxu0
    %v1858 = vadd.f32 0.0, %v1857
    %v1859 = vpop.f32.mrb[0].mxu0
    %1860 = vmatprep.mubr.f32.mxu0 0.0
    %1861 = vmatmul.mubr.f32.gmra.mrb[0].mxu0 %v1558
    %v1862 = vpop.f32.mrb[0].mxu0
    %v1863 = vadd.f32 0.0, %v1862
    %v1864 = vpop.f32.mrb[0].mxu0
    %1865 = vmatprep.mubr.f32.mxu0 0.0
    %1866 = vmatmul.mubr.f32.gmra.mrb[0].mxu0 %v1563
    %v1867 = vpop.f32.mrb[0].mxu0
    %v1868 = vadd.f32 0.0, %v1867
    %v1869 = vpop.f32.mrb[0].mxu0
    %1870 = vdwg.mxu0
    %v1871 = vadd.f32 %v1751, %v1853
    %v1872 = vadd.f32 %v1756, %v1858
    %v1873 = vadd.f32 %v1761, %v1863
    %v1874 = vadd.f32 %v1766, %v1868
    %v1875 = vadd.f32 %v1871, %v1872
    %v1876 = vadd.f32 %v1875, %v1873
    %v1877 = vadd.f32 %v1876, %v1874
    %v1878 = vrot.slane %v1877, 4
    %v1879 = vadd.f32 %v1877, %v1878
    %v1880 = vrot.slane %v1879, 2
    %v1881 = vadd.f32 %v1879, %v1880
    %v1882 = vrot.slane %v1881, 1
    %v1883 = vadd.f32 %v1881, %v1882
    %v1884 = vmul.f32 %v1871, %v1871
    %v1885 = vmul.f32 %v1872, %v1872
    %v1886 = vmul.f32 %v1873, %v1873
    %v1887 = vmul.f32 %v1874, %v1874
    %v1888 = vadd.f32 %v1884, %v1885
    %v1889 = vadd.f32 %v1888, %v1886
    %v1890 = vadd.f32 %v1889, %v1887
    %v1891 = vrot.slane %v1890, 4
    %v1892 = vadd.f32 %v1890, %v1891
    %v1893 = vrot.slane %v1892, 2
    %v1894 = vadd.f32 %v1892, %v1893
    %v1895 = vrot.slane %v1894, 1
    %v1896 = vadd.f32 %v1894, %v1895
    %1897 = vmatprep.subr.mxu0 0.0
    %1898 = vmatpush1.msra.mxu0 %v85
    %1899 = vmatprep.subr.mxu0 0.0
    %1900 = vmatpush1.msra.mxu0 %v86
    %1901 = vmatprep.subr.mxu0 0.0
    %1902 = vmatpush1.msra.mxu0 %v87
    %1903 = vmatprep.subr.mxu0 0.0
    %1904 = vmatpush1.msra.mxu0 %v88
    %1905 = vmatprep.subr.mxu0 0.0
    %1906 = vmatpush1.msra.mxu0 %v89
    %1907 = vmatprep.subr.mxu0 0.0
    %1908 = vmatpush1.msra.mxu0 %v90
    %1909 = vmatprep.subr.mxu0 0.0
    %1910 = vmatpush1.msra.mxu0 %v91
    %1911 = vmatprep.subr.mxu0 0.0
    %1912 = vmatpush1.msra.mxu0 %v92
    %1913 = vmatprep.subr.mxu0 0.0
    %1914 = vmatpush1.msra.mxu0 %v93
    %1915 = vmatprep.subr.mxu0 0.0
    %1916 = vmatpush1.msra.mxu0 %v94
    %1917 = vmatprep.subr.mxu0 0.0
    %1918 = vmatpush1.msra.mxu0 %v95
    %1919 = vmatprep.subr.mxu0 0.0
    %1920 = vmatpush1.msra.mxu0 %v96
    %1921 = vmatprep.subr.mxu0 0.0
    %1922 = vmatpush1.msra.mxu0 %v97
    %1923 = vmatprep.subr.mxu0 0.0
    %1924 = vmatpush1.msra.mxu0 %v98
    %1925 = vmatprep.subr.mxu0 0.0
    %1926 = vmatpush1.msra.mxu0 %v99
    %1927 = vmatprep.subr.mxu0 0.0
    %1928 = vmatpush1.msra.mxu0 %v100
    %1929 = vmatprep.subr.mxu0 0.0
    %1930 = vmatpush1.msra.mxu0 0.0
    %1931 = vmatprep.subr.mxu0 0.0
    %1932 = vmatpush1.msra.mxu0 0.0
    %1933 = vmatprep.subr.mxu0 0.0
    %1934 = vmatpush1.msra.mxu0 0.0
    %1935 = vmatprep.subr.mxu0 0.0
    %1936 = vmatpush1.msra.mxu0 0.0
    %1937 = vmatprep.subr.mxu0 0.0
    %1938 = vmatpush1.msra.mxu0 0.0
    %1939 = vmatprep.subr.mxu0 0.0
    %1940 = vmatpush1.msra.mxu0 0.0
    %1941 = vmatprep.subr.mxu0 0.0
    %1942 = vmatpush1.msra.mxu0 0.0
    %1943 = vmatprep.subr.mxu0 0.0
    %1944 = vmatpush1.msra.mxu0 0.0
    %1945 = vmatprep.subr.mxu0 0.0
    %1946 = vmatpush1.msra.mxu0 0.0
    %1947 = vmatprep.subr.mxu0 0.0
    %1948 = vmatpush1.msra.mxu0 0.0
    %1949 = vmatprep.subr.mxu0 0.0
    %1950 = vmatpush1.msra.mxu0 0.0
    %1951 = vmatprep.subr.mxu0 0.0
    %1952 = vmatpush1.msra.mxu0 0.0
    %1953 = vmatprep.subr.mxu0 0.0
    %1954 = vmatpush1.msra.mxu0 0.0
    %1955 = vmatprep.subr.mxu0 0.0
    %1956 = vmatpush1.msra.mxu0 0.0
    %1957 = vmatprep.subr.mxu0 0.0
    %1958 = vmatpush1.msra.mxu0 0.0
    %1959 = vmatprep.subr.mxu0 0.0
    %1960 = vmatpush1.msra.mxu0 0.0
    %1961 = vmatprep.mubr.f32.mxu0 0.0
    %1962 = vmatmul.mubr.f32.gmra.mrb[0].mxu0 %v1883
    %v1963 = vpop.f32.mrb[0].mxu0
    %v1964 = vadd.f32 0.0, %v1963
    %v1965 = vpop.f32.mrb[0].mxu0
    %1966 = vdwg.mxu0
    %v1967 = vmul.f32 %v1964, 0.001953125
    %1968 = vmatprep.subr.mxu0 0.0
    %1969 = vmatpush1.msra.mxu0 %v85
    %1970 = vmatprep.subr.mxu0 0.0
    %1971 = vmatpush1.msra.mxu0 %v86
    %1972 = vmatprep.subr.mxu0 0.0
    %1973 = vmatpush1.msra.mxu0 %v87
    %1974 = vmatprep.subr.mxu0 0.0
    %1975 = vmatpush1.msra.mxu0 %v88
    %1976 = vmatprep.subr.mxu0 0.0
    %1977 = vmatpush1.msra.mxu0 %v89
    %1978 = vmatprep.subr.mxu0 0.0
    %1979 = vmatpush1.msra.mxu0 %v90
    %1980 = vmatprep.subr.mxu0 0.0
    %1981 = vmatpush1.msra.mxu0 %v91
    %1982 = vmatprep.subr.mxu0 0.0
    %1983 = vmatpush1.msra.mxu0 %v92
    %1984 = vmatprep.subr.mxu0 0.0
    %1985 = vmatpush1.msra.mxu0 %v93
    %1986 = vmatprep.subr.mxu0 0.0
    %1987 = vmatpush1.msra.mxu0 %v94
    %1988 = vmatprep.subr.mxu0 0.0
    %1989 = vmatpush1.msra.mxu0 %v95
    %1990 = vmatprep.subr.mxu0 0.0
    %1991 = vmatpush1.msra.mxu0 %v96
    %1992 = vmatprep.subr.mxu0 0.0
    %1993 = vmatpush1.msra.mxu0 %v97
    %1994 = vmatprep.subr.mxu0 0.0
    %1995 = vmatpush1.msra.mxu0 %v98
    %1996 = vmatprep.subr.mxu0 0.0
    %1997 = vmatpush1.msra.mxu0 %v99
    %1998 = vmatprep.subr.mxu0 0.0
    %1999 = vmatpush1.msra.mxu0 %v100
    %2000 = vmatprep.subr.mxu0 0.0
    %2001 = vmatpush1.msra.mxu0 0.0
    %2002 = vmatprep.subr.mxu0 0.0
    %2003 = vmatpush1.msra.mxu0 0.0
    %2004 = vmatprep.subr.mxu0 0.0
    %2005 = vmatpush1.msra.mxu0 0.0
    %2006 = vmatprep.subr.mxu0 0.0
    %2007 = vmatpush1.msra.mxu0 0.0
    %2008 = vmatprep.subr.mxu0 0.0
    %2009 = vmatpush1.msra.mxu0 0.0
    %2010 = vmatprep.subr.mxu0 0.0
    %2011 = vmatpush1.msra.mxu0 0.0
    %2012 = vmatprep.subr.mxu0 0.0
    %2013 = vmatpush1.msra.mxu0 0.0
    %2014 = vmatprep.subr.mxu0 0.0
    %2015 = vmatpush1.msra.mxu0 0.0
    %2016 = vmatprep.subr.mxu0 0.0
    %2017 = vmatpush1.msra.mxu0 0.0
    %2018 = vmatprep.subr.mxu0 0.0
    %2019 = vmatpush1.msra.mxu0 0.0
    %2020 = vmatprep.subr.mxu0 0.0
    %2021 = vmatpush1.msra.mxu0 0.0
    %2022 = vmatprep.subr.mxu0 0.0
    %2023 = vmatpush1.msra.mxu0 0.0
    %2024 = vmatprep.subr.mxu0 0.0
    %2025 = vmatpush1.msra.mxu0 0.0
    %2026 = vmatprep.subr.mxu0 0.0
    %2027 = vmatpush1.msra.mxu0 0.0
    %2028 = vmatprep.subr.mxu0 0.0
    %2029 = vmatpush1.msra.mxu0 0.0
    %2030 = vmatprep.subr.mxu0 0.0
    %2031 = vmatpush1.msra.mxu0 0.0
    %2032 = vmatprep.mubr.f32.mxu0 0.0
    %2033 = vmatmul.mubr.f32.gmra.mrb[0].mxu0 %v1896
    %v2034 = vpop.f32.mrb[0].mxu0
    %v2035 = vadd.f32 0.0, %v2034
    %v2036 = vpop.f32.mrb[0].mxu0
    %2037 = vdwg.mxu0
    %v2038 = vmul.f32 %v2035, 0.001953125
    %v2039 = vmul.f32 %v1967, %v1967
    %v2040 = vsub.f32 %v2038, %v2039
    %v2041 = vadd.f32 %v2040, 1e-05
    %v2042 = vrsqrt.pop %v2041
    %v2044 = vrot.slane %v2042, 6
    %v2046 = vmul.f32 %v101, %v2044
    %v2048 = vrot.slane %v2046, 2
    %v2050 = vmul.f32 %v1967, %v2048
    %v2052 = vrot.slane %v2050, 5
    %v2054 = vsub.f32 %v101, %v2052
    %v2055 = vsel %vm793, %v2048, 0
    %2057 = vmatprep.subr.mxu0 0.0
    %2058 = vmatpush1.msra.mxu0 %v84
    %2059 = vmatprep.subr.mxu0 0.0
    %2060 = vmatpush1.msra.mxu0 0.0
    %2061 = vmatprep.subr.mxu0 0.0
    %2062 = vmatpush1.msra.mxu0 0.0
    %2063 = vmatprep.subr.mxu0 0.0
    %2064 = vmatpush1.msra.mxu0 0.0
    %2065 = vmatprep.subr.mxu0 0.0
    %2066 = vmatpush1.msra.mxu0 0.0
    %2067 = vmatprep.subr.mxu0 0.0
    %2068 = vmatpush1.msra.mxu0 0.0
    %2069 = vmatprep.subr.mxu0 0.0
    %2070 = vmatpush1.msra.mxu0 0.0
    %2071 = vmatprep.subr.mxu0 0.0
    %2072 = vmatpush1.msra.mxu0 0.0
    %2073 = vmatprep.subr.mxu0 0.0
    %2074 = vmatpush1.msra.mxu0 0.0
    %2075 = vmatprep.subr.mxu0 0.0
    %2076 = vmatpush1.msra.mxu0 0.0
    %2077 = vmatprep.subr.mxu0 0.0
    %2078 = vmatpush1.msra.mxu0 0.0
    %2079 = vmatprep.subr.mxu0 0.0
    %2080 = vmatpush1.msra.mxu0 0.0
    %2081 = vmatprep.subr.mxu0 0.0
    %2082 = vmatpush1.msra.mxu0 0.0
    %2083 = vmatprep.subr.mxu0 0.0
    %2084 = vmatpush1.msra.mxu0 0.0
    %2085 = vmatprep.subr.mxu0 0.0
    %2086 = vmatpush1.msra.mxu0 0.0
    %2087 = vmatprep.subr.mxu0 0.0
    %2088 = vmatpush1.msra.mxu0 0.0
    %2089 = vmatprep.subr.mxu0 0.0
    %2090 = vmatpush1.msra.mxu0 0.0
    %2091 = vmatprep.subr.mxu0 0.0
    %2092 = vmatpush1.msra.mxu0 0.0
    %2093 = vmatprep.subr.mxu0 0.0
    %2094 = vmatpush1.msra.mxu0 0.0
    %2095 = vmatprep.subr.mxu0 0.0
    %2096 = vmatpush1.msra.mxu0 0.0
    %2097 = vmatprep.subr.mxu0 0.0
    %2098 = vmatpush1.msra.mxu0 0.0
    %2099 = vmatprep.subr.mxu0 0.0
    %2100 = vmatpush1.msra.mxu0 0.0
    %2101 = vmatprep.subr.mxu0 0.0
    %2102 = vmatpush1.msra.mxu0 0.0
    %2103 = vmatprep.subr.mxu0 0.0
    %2104 = vmatpush1.msra.mxu0 0.0
    %2105 = vmatprep.subr.mxu0 0.0
    %2106 = vmatpush1.msra.mxu0 0.0
    %2107 = vmatprep.subr.mxu0 0.0
    %2108 = vmatpush1.msra.mxu0 0.0
    %2109 = vmatprep.subr.mxu0 0.0
    %2110 = vmatpush1.msra.mxu0 0.0
    %2111 = vmatprep.subr.mxu0 0.0
    %2112 = vmatpush1.msra.mxu0 0.0
    %2113 = vmatprep.subr.mxu0 0.0
    %2114 = vmatpush1.msra.mxu0 0.0
    %2115 = vmatprep.subr.mxu0 0.0
    %2116 = vmatpush1.msra.mxu0 0.0
    %2117 = vmatprep.subr.mxu0 0.0
    %2118 = vmatpush1.msra.mxu0 0.0
    %2119 = vmatprep.subr.mxu0 0.0
    %2120 = vmatpush1.msra.mxu0 0.0
    %2121 = vmatprep.mubr.f32.mxu0 0.0
    %2122 = vmatmul.mubr.f32.gmra.mrb[0].mxu0 %v2055
    %v2123 = vpop.f32.mrb[0].mxu0
    %v2124 = vadd.f32 0.0, %v2123
    %v2125 = vpop.f32.mrb[0].mxu0
    %2126 = vdwg.mxu0
    %v2128 = vrot.slane %v2054, 3
    %v2129 = vsel %vm793, %v2128, 0
    %2131 = vmatprep.subr.mxu0 0.0
    %2132 = vmatpush1.msra.mxu0 %v84
    %2133 = vmatprep.subr.mxu0 0.0
    %2134 = vmatpush1.msra.mxu0 0.0
    %2135 = vmatprep.subr.mxu0 0.0
    %2136 = vmatpush1.msra.mxu0 0.0
    %2137 = vmatprep.subr.mxu0 0.0
    %2138 = vmatpush1.msra.mxu0 0.0
    %2139 = vmatprep.subr.mxu0 0.0
    %2140 = vmatpush1.msra.mxu0 0.0
    %2141 = vmatprep.subr.mxu0 0.0
    %2142 = vmatpush1.msra.mxu0 0.0
    %2143 = vmatprep.subr.mxu0 0.0
    %2144 = vmatpush1.msra.mxu0 0.0
    %2145 = vmatprep.subr.mxu0 0.0
    %2146 = vmatpush1.msra.mxu0 0.0
    %2147 = vmatprep.subr.mxu0 0.0
    %2148 = vmatpush1.msra.mxu0 0.0
    %2149 = vmatprep.subr.mxu0 0.0
    %2150 = vmatpush1.msra.mxu0 0.0
    %2151 = vmatprep.subr.mxu0 0.0
    %2152 = vmatpush1.msra.mxu0 0.0
    %2153 = vmatprep.subr.mxu0 0.0
    %2154 = vmatpush1.msra.mxu0 0.0
    %2155 = vmatprep.subr.mxu0 0.0
    %2156 = vmatpush1.msra.mxu0 0.0
    %2157 = vmatprep.subr.mxu0 0.0
    %2158 = vmatpush1.msra.mxu0 0.0
    %2159 = vmatprep.subr.mxu0 0.0
    %2160 = vmatpush1.msra.mxu0 0.0
    %2161 = vmatprep.subr.mxu0 0.0
    %2162 = vmatpush1.msra.mxu0 0.0
    %2163 = vmatprep.subr.mxu0 0.0
    %2164 = vmatpush1.msra.mxu0 0.0
    %2165 = vmatprep.subr.mxu0 0.0
    %2166 = vmatpush1.msra.mxu0 0.0
    %2167 = vmatprep.subr.mxu0 0.0
    %2168 = vmatpush1.msra.mxu0 0.0
    %2169 = vmatprep.subr.mxu0 0.0
    %2170 = vmatpush1.msra.mxu0 0.0
    %2171 = vmatprep.subr.mxu0 0.0
    %2172 = vmatpush1.msra.mxu0 0.0
    %2173 = vmatprep.subr.mxu0 0.0
    %2174 = vmatpush1.msra.mxu0 0.0
    %2175 = vmatprep.subr.mxu0 0.0
    %2176 = vmatpush1.msra.mxu0 0.0
    %2177 = vmatprep.subr.mxu0 0.0
    %2178 = vmatpush1.msra.mxu0 0.0
    %2179 = vmatprep.subr.mxu0 0.0
    %2180 = vmatpush1.msra.mxu0 0.0
    %2181 = vmatprep.subr.mxu0 0.0
    %2182 = vmatpush1.msra.mxu0 0.0
    %2183 = vmatprep.subr.mxu0 0.0
    %2184 = vmatpush1.msra.mxu0 0.0
    %2185 = vmatprep.subr.mxu0 0.0
    %2186 = vmatpush1.msra.mxu0 0.0
    %2187 = vmatprep.subr.mxu0 0.0
    %2188 = vmatpush1.msra.mxu0 0.0
    %2189 = vmatprep.subr.mxu0 0.0
    %2190 = vmatpush1.msra.mxu0 0.0
    %2191 = vmatprep.subr.mxu0 0.0
    %2192 = vmatpush1.msra.mxu0 0.0
    %2193 = vmatprep.subr.mxu0 0.0
    %2194 = vmatpush1.msra.mxu0 0.0
    %2195 = vmatprep.mubr.f32.mxu0 0.0
    %2196 = vmatmul.mubr.f32.gmra.mrb[0].mxu0 %v2129
    %v2197 = vpop.f32.mrb[0].mxu0
    %v2198 = vadd.f32 0.0, %v2197
    %v2199 = vpop.f32.mrb[0].mxu0
    %2200 = vdwg.mxu0
    %v2201 = vlaneseq
    %v2202 = vshrl.u32 %v2201, 7
    %v2203 = vsub.s32 0, %v2202
    %v2204 = vrot.slane %v2124, %v2203
    %v2205 = vmul.f32 %v1871, %v2204
    %v2206 = vmul.f32 %v1872, %v2204
    %v2207 = vmul.f32 %v1873, %v2204
    %v2208 = vmul.f32 %v1874, %v2204
    %v2209 = vlaneseq
    %v2210 = vshrl.u32 %v2209, 7
    %v2211 = vsub.s32 0, %v2210
    %v2212 = vrot.slane %v2198, %v2211
    %v2213 = vadd.f32 %v2205, %v2212
    %v2214 = vadd.f32 %v2206, %v2212
    %v2215 = vadd.f32 %v2207, %v2212
    %v2216 = vadd.f32 %v2208, %v2212
    %v2217 = vadd.f32 %v2213, %v1392
    %v2218 = vadd.f32 %v2214, %v1393
    %v2219 = vadd.f32 %v2215, %v1394
    %v2220 = vadd.f32 %v2216, %v1395
    %v2221 = vmax.f32 %v2217, 0.0
    %v2222 = vmax.f32 %v2218, 0.0
    %v2223 = vmax.f32 %v2219, 0.0
    %v2224 = vmax.f32 %v2220, 0.0
    %2225 = vst [vmem:[#allocation8] sm:$0xff] %v2221
    %2226 = vst [vmem:[#allocation8 + $0x8] sm:$0xff] %v2222
    %2227 = vst [vmem:[#allocation8 + $0x10] sm:$0xff] %v2223
    %2228 = vst [vmem:[#allocation8 + $0x18] sm:$0xff] %v2224
    // Predicated region
    $region46: #{tpu_custom_call.1} parent=1 // pred_check
      _
    $region47: #{tpu_custom_call.1} parent=1 // pred_check_branch
      %2230 = sbr.rel (0) target = $region49
    $region48: #{tpu_custom_call.1} parent=1 // pred_region
      %s2232 = ssub.s32 512, 512
      %2233 = vsyncadd [#allocation4], %s2232
      %s2234 = sshll.u32 [#allocation8], 4
      %s2235 = int_to_ptr.vmem [resolvable:$true] %s2234
      %2240 = dma.vmem_to_hbm [thread:$0]  %s2235, 512, %s8, [#allocation4], 128, 128, 8
    $region49: #{tpu_custom_call.1} parent=1 // pred_fallthru
      _
    // Predicated region
    $region50: #{tpu_custom_call.1} parent=1 // pred_check
      _
    $region51: #{tpu_custom_call.1} parent=1 // pred_check_branch
      %2242 = sbr.rel (0) target = $region53
    $region52: #{tpu_custom_call.1} parent=1 // pred_region
      %2243 = dma.done [#allocation4], 512
    $region53: #{tpu_custom_call.1} parent=1 // pred_fallthru
      _
    %2244 = vsyncpa [#allocation3], 1
    %2245 = vsyncpa [#allocation6], 1
    %2246 = vsyncpa [#allocation4], 1

</llo_original>
